<compile_context>
chip_gen: v7x
topology: tpu7x:2x2x1
jax: 0.10.0
libtpu: 0.0.40
codegen_flags: <defaults>
</compile_context>

<pallas_src>
import math
from functools import partial

import jax
import jax.numpy as jnp
from jax.experimental import pallas as pl
from jax.experimental.pallas import tpu as pltpu


def guided_attention_kernel(
    hs_ref, ctx_ref,
    wq_ref, bq_ref, wk_ref, bk_ref, wv_ref, bv_ref,
    wobs_ref, bobs_ref, wmat_ref, bmat_ref,
    gln_ref, bln_ref,
    out_ref,
    *, num_heads: int, eps: float = 1e-5,
):
    Bt, Sq, E = hs_ref.shape
    _, Sk, _ = ctx_ref.shape
    d = E // num_heads
    f32 = jnp.float32
    bf16 = jnp.bfloat16

    # --- hoist parameter loads (read each ref exactly once) ---
    bq = bq_ref[...]
    bk = bk_ref[...]
    bv = bv_ref[...]
    bobs = bobs_ref[...]
    bmat = bmat_ref[...]
    gln = gln_ref[...]
    bln = bln_ref[...]

    # Flatten (batch_tile, seq) into the MXU M dimension for all projections.
    hs_flat = hs_ref[...].reshape(Bt * Sq, E)     # bf16
    ctx_flat = ctx_ref[...].reshape(Bt * Sk, E)   # bf16

    # --- Q/K/V projections (nn.Linear: y = x @ W^T + b, W pre-transposed).
    # bf16 operands, f32 MXU accumulation.  1/sqrt(E) is pre-folded into wq/bq.
    q_flat = jnp.dot(hs_flat, wq_ref[...], preferred_element_type=f32) + bq
    k_flat = jnp.dot(ctx_flat, wk_ref[...], preferred_element_type=f32) + bk
    v_flat = jnp.dot(ctx_flat, wv_ref[...], preferred_element_type=f32) + bv

    q_bf = q_flat.astype(bf16).reshape(Bt, Sq, E)   # already carries 1/sqrt(E)
    k_bf = k_flat.astype(bf16).reshape(Bt, Sk, E)
    v_bf = v_flat.astype(bf16).reshape(Bt, Sk, E)

    # --- Guide block: scaled dot-product attention over the full hidden dim ---
    # TODO(synk): for long Sq/Sk, add an Sk grid axis with online-softmax
    # accumulators (flash-style) instead of materializing (Sq, Sk) scores.
    s = jnp.einsum('bqe,bke->bqk', q_bf, k_bf, preferred_element_type=f32)
    s = s - jnp.max(s, axis=-1, keepdims=True)
    p = jnp.exp(s)
    attn = p * pl.reciprocal(jnp.sum(p, axis=-1, keepdims=True), approx=True)
    ctx_g = jnp.einsum('bqk,bke->bqe', attn.astype(bf16), v_bf,
                       preferred_element_type=f32)              # (Bt, Sq, E) f32

    def relu_linear_ln(x_bf, w_ref, b):
        y = jnp.dot(x_bf, w_ref[...], preferred_element_type=f32) + b
        y = jnp.maximum(y, 0.0)
        mu = jnp.mean(y, axis=-1, keepdims=True)
        var = jnp.mean((y - mu) ** 2, axis=-1, keepdims=True)
        yn = (y - mu) * jax.lax.rsqrt(var + eps)
        return yn * gln + bln

    # Guide_Block shares one LayerNorm between the two branches.
    new_q = relu_linear_ln(ctx_g.reshape(Bt * Sq, E).astype(bf16), wobs_ref, bobs)
    new_k = relu_linear_ln(k_flat.astype(bf16), wmat_ref, bmat)

    # Fold the 1/sqrt(d) multi-head scale into new_q once (instead of scaling
    # every per-head (Sq, Sk) score tile).
    new_q = (new_q * (1.0 / math.sqrt(d))).astype(bf16).reshape(Bt, Sq, E)
    new_k = new_k.astype(bf16).reshape(Bt, Sk, E)

    # --- Multi-head attention: guided Q, guided K, original V ---
    # TODO(synk): for large num_heads, batch the heads into a single
    # contraction (needs a (Bt,H,S,d) relayout or an `h` grid axis); Mosaic's
    # dot_general does not reliably support two batch dims, so a small static
    # head loop with static lane slices is used here.
    head_outs = []
    for h in range(num_heads):
        lo = h * d
        qh = new_q[:, :, lo:lo + d]     # (Bt, Sq, d) static lane slice
        kh = new_k[:, :, lo:lo + d]
        vh = v_bf[:, :, lo:lo + d]
        sc = jnp.einsum('bqd,bkd->bqk', qh, kh, preferred_element_type=f32)
        sc = sc - jnp.max(sc, axis=-1, keepdims=True)
        pe = jnp.exp(sc)
        probs = pe * pl.reciprocal(jnp.sum(pe, axis=-1, keepdims=True), approx=True)
        head_outs.append(jnp.einsum('bqk,bkd->bqd', probs.astype(bf16), vh,
                                    preferred_element_type=f32))

    # Single (Bt, Sq, E) store instead of per-head d-wide partial writes.
    # TODO(synk): when E < 128, a lane-dense (Bt, Sq*E) out_spec (reshape in
    # the wrapper) would avoid masked vst; it needs a minor-dim relayout
    # in-kernel, so it is not applied here.
    out_ref[...] = jnp.concatenate(head_outs, axis=-1)


def _tpu_kind() -> str:
    try:
        return jax.devices()[0].device_kind.lower()
    except Exception:
        return ""


def _pick_batch_tile(B: int, Sq: int, kind: str) -> int:
    """Largest divisor of B such that B_tile*Sq roughly fills the MXU M dim.

    Generation-aware: v6e/v7x have a 2x256x256 MXU (target 256 rows), v5e a
    4x128x128 MXU (target 128).  On v7x we additionally keep >= 2 grid steps
    so the "parallel" batch axis can shard across the two TensorCores.
    Only exact divisors of B are used (grid = B // B_tile); awkward batch
    sizes (e.g. prime B) fall back to B_tile = 1, which remains correct.
    """
    mxu_rows = 128 if "v5" in kind else 256
    max_tile = B // 2 if ("v7" in kind and B >= 2) else B
    max_tile = max(1, max_tile)
    target = max(1, mxu_rows // max(Sq, 1))
    best = 1
    for t in range(1, B + 1):
        if B % t == 0 and t <= max_tile and t <= target:
            best = t
    return best


def _vmem_limit_bytes(B_tile: int, Sq: int, Sk: int, E: int) -> int:
    """Explicit scoped-VMEM budget (default is only 16/32 MiB)."""
    bf16, f32 = 2, 4
    act = 2 * B_tile * (Sq + Sk) * E * bf16 + 2 * B_tile * Sq * E * f32
    wgt = 2 * (5 * E * E * bf16 + 7 * E * f32)            # double-buffered params
    scratch = B_tile * (3 * (Sq + 2 * Sk) * E + 2 * Sq * Sk + 4 * Sq * E) * f32
    est = act + wgt + scratch
    # 4x headroom, floor 32 MiB, cap at v7x physical VMEM (64 MiB).
    return int(min(64 * 1024 * 1024, max(32 * 1024 * 1024, 4 * est)))


def guided_attention(hidden_states, context, params, num_heads):
    B, Sq, E = hidden_states.shape
    _, Sk, _ = context.shape
    kind = _tpu_kind()
    B_tile = _pick_batch_tile(B, Sq, kind)
    grid = (B // B_tile,)

    (wq, bq, wk, bk, wv, bv, wobs, bobs, wmat, bmat, gln, bln) = params
    inv_sqrt_e = 1.0 / math.sqrt(E)
    bf16 = jnp.bfloat16
    f32 = jnp.float32

    # Fold the guide-attention 1/sqrt(E) scale into the query projection and
    # hand the kernel bf16 weights/activations (the MXU accumulates in f32).
    kernel_args = (
        hidden_states.astype(bf16), context.astype(bf16),
        (wq * inv_sqrt_e).astype(bf16), (bq * inv_sqrt_e).astype(f32),
        wk.astype(bf16), bk.astype(f32),
        wv.astype(bf16), bv.astype(f32),
        wobs.astype(bf16), bobs.astype(f32),
        wmat.astype(bf16), bmat.astype(f32),
        gln.astype(f32), bln.astype(f32),
    )

    def wspec():
        # TODO(synk): constant-index weight blocks are still double-buffered by
        # the pipeline; at large E hold them in a persistent VMEM copy instead
        # (memory_space=pl.ANY + one manual DMA at grid step 0).
        return pl.BlockSpec((E, E), lambda b: (0, 0))

    def vspec():
        return pl.BlockSpec((1, E), lambda b: (0, 0))

    in_specs = [
        pl.BlockSpec((B_tile, Sq, E), lambda b: (b, 0, 0)),   # hidden_states
        pl.BlockSpec((B_tile, Sk, E), lambda b: (b, 0, 0)),   # context
        wspec(), vspec(),   # query proj (1/sqrt(E) pre-folded)
        wspec(), vspec(),   # key proj
        wspec(), vspec(),   # value proj
        wspec(), vspec(),   # guide.linear_observer
        wspec(), vspec(),   # guide.linear_matrix
        vspec(), vspec(),   # guide.layer_norm gamma / beta
    ]

    return pl.pallas_call(
        partial(guided_attention_kernel, num_heads=num_heads),
        out_shape=jax.ShapeDtypeStruct((B, Sq, E), jnp.float32),
        grid_spec=pltpu.PrefetchScalarGridSpec(
            num_scalar_prefetch=0,
            grid=grid,
            in_specs=in_specs,
            out_specs=pl.BlockSpec((B_tile, Sq, E), lambda b: (b, 0, 0)),
        ),
        compiler_params=pltpu.CompilerParams(
            dimension_semantics=("parallel",),
            vmem_limit_bytes=_vmem_limit_bytes(B_tile, Sq, Sk, E),
        ),
    )(*kernel_args)


def reference(hs, ctx, params, num_heads):
    """Pure-JAX f32 reference matching the PyTorch forward (eval mode)."""
    wq, bq, wk, bk, wv, bv, wobs, bobs, wmat, bmat, g, be = params
    q = hs @ wq + bq
    k = ctx @ wk + bk
    v = ctx @ wv + bv
    E = q.shape[-1]
    s = jnp.einsum('bqe,bke->bqk', q, k) / jnp.sqrt(E)
    attn = jax.nn.softmax(s, -1)
    cg = jnp.einsum('bqk,bke->bqe', attn, v)

    def ln(y):
        mu = y.mean(-1, keepdims=True)
        var = ((y - mu) ** 2).mean(-1, keepdims=True)
        return (y - mu) / jnp.sqrt(var + 1e-5) * g + be

    nq = ln(jax.nn.relu(cg @ wobs + bobs))
    nk = ln(jax.nn.relu(k @ wmat + bmat))
    B, Sq, _ = q.shape
    Sk = k.shape[1]
    d = E // num_heads
    qh = nq.reshape(B, Sq, num_heads, d).transpose(0, 2, 1, 3)
    kh = nk.reshape(B, Sk, num_heads, d).transpose(0, 2, 1, 3)
    vh = v.reshape(B, Sk, num_heads, d).transpose(0, 2, 1, 3)
    sc = jnp.einsum('bhqd,bhkd->bhqk', qh, kh) / jnp.sqrt(d)
    pr = jax.nn.softmax(sc, -1)
    o = jnp.einsum('bhqk,bhkd->bhqd', pr, vh)
    return o.transpose(0, 2, 1, 3).reshape(B, Sq, E)


if __name__ == "__main__":
    B, Sq, Sk, E, H = 2, 8, 16, 32, 4   # embedding_size=32, n_heads=4

    key = jax.random.PRNGKey(0)
    keys = jax.random.split(key, 12)

    def w(k):
        return jax.random.normal(k, (E, E), jnp.float32) * 0.05

    def b(k):
        return jax.random.normal(k, (1, E), jnp.float32) * 0.05

    params = (
        w(keys[0]), b(keys[1]),          # query
        w(keys[2]), b(keys[3]),          # key
        w(keys[4]), b(keys[5]),          # value
        w(keys[6]), b(keys[7]),          # guide.linear_observer
        w(keys[8]), b(keys[9]),          # guide.linear_matrix
        jnp.ones((1, E), jnp.float32),   # guide.layer_norm weight
        jnp.zeros((1, E), jnp.float32),  # guide.layer_norm bias
    )

    hidden_states = jax.random.normal(keys[10], (B, Sq, E), jnp.float32)
    context = jax.random.normal(keys[11], (B, Sq * 2, E), jnp.float32)

    out = guided_attention(hidden_states, context, params, H)
    out = jax.block_until_ready(out)

    ref = reference(hidden_states, context, params, H)
    assert out.shape == (B, Sq, E)
    # Tolerance accounts for bf16 MXU operands (f32 accumulation) through two
    # chained softmaxes + LayerNorm, plus the EUP approximate reciprocal.
    assert jnp.allclose(out, ref, atol=5e-2, rtol=5e-2), float(jnp.max(jnp.abs(out - ref)))

    print("KERNEL_OK")
</pallas_src>

<mosaic_0001>
module attributes {stable_mosaic.version = 11 : i64} {
  func.func @guided_attention_kernel(%arg0: i32, %arg1: memref<2x8x32xbf16, #tpu.memory_space<vmem>>, %arg2: memref<2x16x32xbf16, #tpu.memory_space<vmem>>, %arg3: memref<32x32xbf16, #tpu.memory_space<vmem>>, %arg4: memref<1x32xf32, #tpu.memory_space<vmem>>, %arg5: memref<32x32xbf16, #tpu.memory_space<vmem>>, %arg6: memref<1x32xf32, #tpu.memory_space<vmem>>, %arg7: memref<32x32xbf16, #tpu.memory_space<vmem>>, %arg8: memref<1x32xf32, #tpu.memory_space<vmem>>, %arg9: memref<32x32xbf16, #tpu.memory_space<vmem>>, %arg10: memref<1x32xf32, #tpu.memory_space<vmem>>, %arg11: memref<32x32xbf16, #tpu.memory_space<vmem>>, %arg12: memref<1x32xf32, #tpu.memory_space<vmem>>, %arg13: memref<1x32xf32, #tpu.memory_space<vmem>>, %arg14: memref<1x32xf32, #tpu.memory_space<vmem>>, %arg15: memref<2x8x32xf32, #tpu.memory_space<vmem>>) attributes {dimension_semantics = [#tpu.dimension_semantics<parallel>], iteration_bounds = array<i64: 1>, scalar_prefetch = 0 : i64, scratch_operands = 0 : i64, tpu.core_type = #tpu.core_type<tc>, window_params = [{transform_indices = @transform_0, window_bounds = array<i64: 2, 8, 32>}, {transform_indices = @transform_1, window_bounds = array<i64: 2, 16, 32>}, {pipeline_mode = #tpu.pipeline_mode<synchronous>, transform_indices = @transform_2, window_bounds = array<i64: 32, 32>}, {pipeline_mode = #tpu.pipeline_mode<synchronous>, transform_indices = @transform_3, window_bounds = array<i64: 1, 32>}, {pipeline_mode = #tpu.pipeline_mode<synchronous>, transform_indices = @transform_4, window_bounds = array<i64: 32, 32>}, {pipeline_mode = #tpu.pipeline_mode<synchronous>, transform_indices = @transform_5, window_bounds = array<i64: 1, 32>}, {pipeline_mode = #tpu.pipeline_mode<synchronous>, transform_indices = @transform_6, window_bounds = array<i64: 32, 32>}, {pipeline_mode = #tpu.pipeline_mode<synchronous>, transform_indices = @transform_7, window_bounds = array<i64: 1, 32>}, {pipeline_mode = #tpu.pipeline_mode<synchronous>, transform_indices = @transform_8, window_bounds = array<i64: 32, 32>}, {pipeline_mode = #tpu.pipeline_mode<synchronous>, transform_indices = @transform_9, window_bounds = array<i64: 1, 32>}, {pipeline_mode = #tpu.pipeline_mode<synchronous>, transform_indices = @transform_10, window_bounds = array<i64: 32, 32>}, {pipeline_mode = #tpu.pipeline_mode<synchronous>, transform_indices = @transform_11, window_bounds = array<i64: 1, 32>}, {pipeline_mode = #tpu.pipeline_mode<synchronous>, transform_indices = @transform_12, window_bounds = array<i64: 1, 32>}, {pipeline_mode = #tpu.pipeline_mode<synchronous>, transform_indices = @transform_13, window_bounds = array<i64: 1, 32>}, {transform_indices = @transform_14, window_bounds = array<i64: 2, 8, 32>}]} {
    %c0 = arith.constant 0 : index
    %c0_0 = arith.constant 0 : index
    %0 = vector.load %arg4[%c0, %c0_0] : memref<1x32xf32, #tpu.memory_space<vmem>>, vector<1x32xf32>
    %c0_1 = arith.constant 0 : index
    %c0_2 = arith.constant 0 : index
    %1 = vector.load %arg6[%c0_1, %c0_2] : memref<1x32xf32, #tpu.memory_space<vmem>>, vector<1x32xf32>
    %c0_3 = arith.constant 0 : index
    %c0_4 = arith.constant 0 : index
    %2 = vector.load %arg8[%c0_3, %c0_4] : memref<1x32xf32, #tpu.memory_space<vmem>>, vector<1x32xf32>
    %c0_5 = arith.constant 0 : index
    %c0_6 = arith.constant 0 : index
    %3 = vector.load %arg10[%c0_5, %c0_6] : memref<1x32xf32, #tpu.memory_space<vmem>>, vector<1x32xf32>
    %c0_7 = arith.constant 0 : index
    %c0_8 = arith.constant 0 : index
    %4 = vector.load %arg12[%c0_7, %c0_8] : memref<1x32xf32, #tpu.memory_space<vmem>>, vector<1x32xf32>
    %c0_9 = arith.constant 0 : index
    %c0_10 = arith.constant 0 : index
    %5 = vector.load %arg13[%c0_9, %c0_10] : memref<1x32xf32, #tpu.memory_space<vmem>>, vector<1x32xf32>
    %c0_11 = arith.constant 0 : index
    %c0_12 = arith.constant 0 : index
    %6 = vector.load %arg14[%c0_11, %c0_12] : memref<1x32xf32, #tpu.memory_space<vmem>>, vector<1x32xf32>
    %c0_13 = arith.constant 0 : index
    %c0_14 = arith.constant 0 : index
    %c0_15 = arith.constant 0 : index
    %7 = vector.load %arg1[%c0_13, %c0_14, %c0_15] : memref<2x8x32xbf16, #tpu.memory_space<vmem>>, vector<2x8x32xbf16>
    %8 = vector.shape_cast %7 : vector<2x8x32xbf16> to vector<16x32xbf16>
    %c0_16 = arith.constant 0 : index
    %c0_17 = arith.constant 0 : index
    %c0_18 = arith.constant 0 : index
    %9 = vector.load %arg2[%c0_16, %c0_17, %c0_18] : memref<2x16x32xbf16, #tpu.memory_space<vmem>>, vector<2x16x32xbf16>
    %10 = vector.shape_cast %9 : vector<2x16x32xbf16> to vector<32x32xbf16>
    %c0_19 = arith.constant 0 : index
    %c0_20 = arith.constant 0 : index
    %11 = vector.load %arg3[%c0_19, %c0_20] : memref<32x32xbf16, #tpu.memory_space<vmem>>, vector<32x32xbf16>
    %cst = arith.constant dense<0.000000e+00> : vector<16x32xf32>
    %12 = tpu.matmul %8, %11, %cst {dimension_numbers = #tpu.dot_dimension_numbers<[1], [0], [0], [1], [0, 0, 1, 1], [], []>} : vector<16x32xbf16>, vector<32x32xbf16>, vector<16x32xf32> -> vector<16x32xf32>
    %13 = vector.broadcast %0 : vector<1x32xf32> to vector<16x32xf32>
    %14 = arith.addf %12, %13 : vector<16x32xf32>
    %c0_21 = arith.constant 0 : index
    %c0_22 = arith.constant 0 : index
    %15 = vector.load %arg5[%c0_21, %c0_22] : memref<32x32xbf16, #tpu.memory_space<vmem>>, vector<32x32xbf16>
    %cst_23 = arith.constant dense<0.000000e+00> : vector<32x32xf32>
    %16 = tpu.matmul %10, %15, %cst_23 {dimension_numbers = #tpu.dot_dimension_numbers<[1], [0], [0], [1], [0, 0, 1, 1], [], []>} : vector<32x32xbf16>, vector<32x32xbf16>, vector<32x32xf32> -> vector<32x32xf32>
    %17 = vector.broadcast %1 : vector<1x32xf32> to vector<32x32xf32>
    %18 = arith.addf %16, %17 : vector<32x32xf32>
    %c0_24 = arith.constant 0 : index
    %c0_25 = arith.constant 0 : index
    %19 = vector.load %arg7[%c0_24, %c0_25] : memref<32x32xbf16, #tpu.memory_space<vmem>>, vector<32x32xbf16>
    %cst_26 = arith.constant dense<0.000000e+00> : vector<32x32xf32>
    %20 = tpu.matmul %10, %19, %cst_26 {dimension_numbers = #tpu.dot_dimension_numbers<[1], [0], [0], [1], [0, 0, 1, 1], [], []>} : vector<32x32xbf16>, vector<32x32xbf16>, vector<32x32xf32> -> vector<32x32xf32>
    %21 = vector.broadcast %2 : vector<1x32xf32> to vector<32x32xf32>
    %22 = arith.addf %20, %21 : vector<32x32xf32>
    %23 = arith.truncf %14 : vector<16x32xf32> to vector<16x32xbf16>
    %24 = vector.shape_cast %23 : vector<16x32xbf16> to vector<2x8x32xbf16>
    %25 = arith.truncf %18 : vector<32x32xf32> to vector<32x32xbf16>
    %26 = vector.shape_cast %25 : vector<32x32xbf16> to vector<2x16x32xbf16>
    %27 = arith.truncf %22 : vector<32x32xf32> to vector<32x32xbf16>
    %28 = vector.shape_cast %27 : vector<32x32xbf16> to vector<2x16x32xbf16>
    "tpu.trace_start"() <{level = 10 : i32, message = "bqe,bke->bqk"}> : () -> ()
    %cst_27 = arith.constant dense<0.000000e+00> : vector<2x8x16xf32>
    %29 = tpu.matmul %24, %26, %cst_27 {dimension_numbers = #tpu.dot_dimension_numbers<[2], [2], [1], [1], [0, 0, 0, 1, 1, 1], [0], [0]>} : vector<2x8x32xbf16>, vector<2x16x32xbf16>, vector<2x8x16xf32> -> vector<2x8x16xf32>
    "tpu.trace_stop"() : () -> ()
    %cst_28 = arith.constant dense<0xFF800000> : vector<2x8xf32>
    %30 = vector.multi_reduction <maximumf>, %29, %cst_28 [2] : vector<2x8x16xf32> to vector<2x8xf32>
    %31 = vector.shape_cast %30 : vector<2x8xf32> to vector<2x8x1xf32>
    %32 = vector.broadcast %31 : vector<2x8x1xf32> to vector<2x8x16xf32>
    %33 = arith.subf %29, %32 : vector<2x8x16xf32>
    %34 = math.exp %33 : vector<2x8x16xf32>
    %cst_29 = arith.constant dense<0.000000e+00> : vector<2x8xf32>
    %35 = vector.multi_reduction <add>, %34, %cst_29 [2] : vector<2x8x16xf32> to vector<2x8xf32>
    %36 = vector.shape_cast %35 : vector<2x8xf32> to vector<2x8x1xf32>
    %37 = tpu.reciprocal %36 {approx = true} : vector<2x8x1xf32> -> vector<2x8x1xf32>
    %38 = vector.broadcast %37 : vector<2x8x1xf32> to vector<2x8x16xf32>
    %39 = arith.mulf %34, %38 : vector<2x8x16xf32>
    %40 = arith.truncf %39 : vector<2x8x16xf32> to vector<2x8x16xbf16>
    "tpu.trace_start"() <{level = 10 : i32, message = "bqk,bke->bqe"}> : () -> ()
    %cst_30 = arith.constant dense<0.000000e+00> : vector<2x8x32xf32>
    %41 = tpu.matmul %40, %28, %cst_30 {dimension_numbers = #tpu.dot_dimension_numbers<[2], [1], [1], [2], [0, 0, 0, 1, 1, 2], [0], [0]>} : vector<2x8x16xbf16>, vector<2x16x32xbf16>, vector<2x8x32xf32> -> vector<2x8x32xf32>
    "tpu.trace_stop"() : () -> ()
    %42 = vector.shape_cast %41 : vector<2x8x32xf32> to vector<16x32xf32>
    %43 = arith.truncf %42 : vector<16x32xf32> to vector<16x32xbf16>
    %c0_31 = arith.constant 0 : index
    %c0_32 = arith.constant 0 : index
    %44 = vector.load %arg9[%c0_31, %c0_32] : memref<32x32xbf16, #tpu.memory_space<vmem>>, vector<32x32xbf16>
    %cst_33 = arith.constant dense<0.000000e+00> : vector<16x32xf32>
    %45 = tpu.matmul %43, %44, %cst_33 {dimension_numbers = #tpu.dot_dimension_numbers<[1], [0], [0], [1], [0, 0, 1, 1], [], []>} : vector<16x32xbf16>, vector<32x32xbf16>, vector<16x32xf32> -> vector<16x32xf32>
    %46 = vector.broadcast %3 : vector<1x32xf32> to vector<16x32xf32>
    %47 = arith.addf %45, %46 : vector<16x32xf32>
    %cst_34 = arith.constant 0.000000e+00 : f32
    %48 = vector.broadcast %cst_34 : f32 to vector<16x32xf32>
    %49 = arith.maximumf %47, %48 : vector<16x32xf32>
    %cst_35 = arith.constant dense<0.000000e+00> : vector<16xf32>
    %50 = vector.multi_reduction <add>, %49, %cst_35 [1] : vector<16x32xf32> to vector<16xf32>
    %51 = vector.shape_cast %50 : vector<16xf32> to vector<16x1xf32>
    %cst_36 = arith.constant 3.200000e+01 : f32
    %52 = vector.broadcast %cst_36 : f32 to vector<16x1xf32>
    %53 = arith.divf %51, %52 : vector<16x1xf32>
    %54 = vector.broadcast %53 : vector<16x1xf32> to vector<16x32xf32>
    %55 = arith.subf %49, %54 : vector<16x32xf32>
    %56 = arith.mulf %55, %55 : vector<16x32xf32>
    %cst_37 = arith.constant dense<0.000000e+00> : vector<16xf32>
    %57 = vector.multi_reduction <add>, %56, %cst_37 [1] : vector<16x32xf32> to vector<16xf32>
    %58 = vector.shape_cast %57 : vector<16xf32> to vector<16x1xf32>
    %cst_38 = arith.constant 3.200000e+01 : f32
    %59 = vector.broadcast %cst_38 : f32 to vector<16x1xf32>
    %60 = arith.divf %58, %59 : vector<16x1xf32>
    %61 = vector.broadcast %53 : vector<16x1xf32> to vector<16x32xf32>
    %62 = arith.subf %49, %61 : vector<16x32xf32>
    %cst_39 = arith.constant 9.99999974E-6 : f32
    %63 = vector.broadcast %cst_39 : f32 to vector<16x1xf32>
    %64 = arith.addf %60, %63 : vector<16x1xf32>
    %65 = math.rsqrt %64 : vector<16x1xf32>
    %66 = vector.broadcast %65 : vector<16x1xf32> to vector<16x32xf32>
    %67 = arith.mulf %62, %66 : vector<16x32xf32>
    %68 = vector.broadcast %5 : vector<1x32xf32> to vector<16x32xf32>
    %69 = arith.mulf %67, %68 : vector<16x32xf32>
    %70 = vector.broadcast %6 : vector<1x32xf32> to vector<16x32xf32>
    %71 = arith.addf %69, %70 : vector<16x32xf32>
    %72 = arith.truncf %18 : vector<32x32xf32> to vector<32x32xbf16>
    %c0_40 = arith.constant 0 : index
    %c0_41 = arith.constant 0 : index
    %73 = vector.load %arg11[%c0_40, %c0_41] : memref<32x32xbf16, #tpu.memory_space<vmem>>, vector<32x32xbf16>
    %cst_42 = arith.constant dense<0.000000e+00> : vector<32x32xf32>
    %74 = tpu.matmul %72, %73, %cst_42 {dimension_numbers = #tpu.dot_dimension_numbers<[1], [0], [0], [1], [0, 0, 1, 1], [], []>} : vector<32x32xbf16>, vector<32x32xbf16>, vector<32x32xf32> -> vector<32x32xf32>
    %75 = vector.broadcast %4 : vector<1x32xf32> to vector<32x32xf32>
    %76 = arith.addf %74, %75 : vector<32x32xf32>
    %cst_43 = arith.constant 0.000000e+00 : f32
    %77 = vector.broadcast %cst_43 : f32 to vector<32x32xf32>
    %78 = arith.maximumf %76, %77 : vector<32x32xf32>
    %cst_44 = arith.constant dense<0.000000e+00> : vector<32xf32>
    %79 = vector.multi_reduction <add>, %78, %cst_44 [1] : vector<32x32xf32> to vector<32xf32>
    %80 = vector.shape_cast %79 : vector<32xf32> to vector<32x1xf32>
    %cst_45 = arith.constant 3.200000e+01 : f32
    %81 = vector.broadcast %cst_45 : f32 to vector<32x1xf32>
    %82 = arith.divf %80, %81 : vector<32x1xf32>
    %83 = vector.broadcast %82 : vector<32x1xf32> to vector<32x32xf32>
    %84 = arith.subf %78, %83 : vector<32x32xf32>
    %85 = arith.mulf %84, %84 : vector<32x32xf32>
    %cst_46 = arith.constant dense<0.000000e+00> : vector<32xf32>
    %86 = vector.multi_reduction <add>, %85, %cst_46 [1] : vector<32x32xf32> to vector<32xf32>
    %87 = vector.shape_cast %86 : vector<32xf32> to vector<32x1xf32>
    %cst_47 = arith.constant 3.200000e+01 : f32
    %88 = vector.broadcast %cst_47 : f32 to vector<32x1xf32>
    %89 = arith.divf %87, %88 : vector<32x1xf32>
    %90 = vector.broadcast %82 : vector<32x1xf32> to vector<32x32xf32>
    %91 = arith.subf %78, %90 : vector<32x32xf32>
    %cst_48 = arith.constant 9.99999974E-6 : f32
    %92 = vector.broadcast %cst_48 : f32 to vector<32x1xf32>
    %93 = arith.addf %89, %92 : vector<32x1xf32>
    %94 = math.rsqrt %93 : vector<32x1xf32>
    %95 = vector.broadcast %94 : vector<32x1xf32> to vector<32x32xf32>
    %96 = arith.mulf %91, %95 : vector<32x32xf32>
    %97 = vector.broadcast %5 : vector<1x32xf32> to vector<32x32xf32>
    %98 = arith.mulf %96, %97 : vector<32x32xf32>
    %99 = vector.broadcast %6 : vector<1x32xf32> to vector<32x32xf32>
    %100 = arith.addf %98, %99 : vector<32x32xf32>
    %cst_49 = arith.constant 0.353553385 : f32
    %101 = vector.broadcast %cst_49 : f32 to vector<16x32xf32>
    %102 = arith.mulf %71, %101 : vector<16x32xf32>
    %103 = arith.truncf %102 : vector<16x32xf32> to vector<16x32xbf16>
    %104 = vector.shape_cast %103 : vector<16x32xbf16> to vector<2x8x32xbf16>
    %105 = arith.truncf %100 : vector<32x32xf32> to vector<32x32xbf16>
    %106 = vector.shape_cast %105 : vector<32x32xbf16> to vector<2x16x32xbf16>
    %107 = vector.extract_strided_slice %104 {offsets = [0, 0, 0], sizes = [2, 8, 8], strides = [1, 1, 1]} : vector<2x8x32xbf16> to vector<2x8x8xbf16>
    %108 = vector.extract_strided_slice %106 {offsets = [0, 0, 0], sizes = [2, 16, 8], strides = [1, 1, 1]} : vector<2x16x32xbf16> to vector<2x16x8xbf16>
    %109 = vector.extract_strided_slice %28 {offsets = [0, 0, 0], sizes = [2, 16, 8], strides = [1, 1, 1]} : vector<2x16x32xbf16> to vector<2x16x8xbf16>
    "tpu.trace_start"() <{level = 10 : i32, message = "bqd,bkd->bqk"}> : () -> ()
    %cst_50 = arith.constant dense<0.000000e+00> : vector<2x8x16xf32>
    %110 = tpu.matmul %107, %108, %cst_50 {dimension_numbers = #tpu.dot_dimension_numbers<[2], [2], [1], [1], [0, 0, 0, 1, 1, 1], [0], [0]>} : vector<2x8x8xbf16>, vector<2x16x8xbf16>, vector<2x8x16xf32> -> vector<2x8x16xf32>
    "tpu.trace_stop"() : () -> ()
    %cst_51 = arith.constant dense<0xFF800000> : vector<2x8xf32>
    %111 = vector.multi_reduction <maximumf>, %110, %cst_51 [2] : vector<2x8x16xf32> to vector<2x8xf32>
    %112 = vector.shape_cast %111 : vector<2x8xf32> to vector<2x8x1xf32>
    %113 = vector.broadcast %112 : vector<2x8x1xf32> to vector<2x8x16xf32>
    %114 = arith.subf %110, %113 : vector<2x8x16xf32>
    %115 = math.exp %114 : vector<2x8x16xf32>
    %cst_52 = arith.constant dense<0.000000e+00> : vector<2x8xf32>
    %116 = vector.multi_reduction <add>, %115, %cst_52 [2] : vector<2x8x16xf32> to vector<2x8xf32>
    %117 = vector.shape_cast %116 : vector<2x8xf32> to vector<2x8x1xf32>
    %118 = tpu.reciprocal %117 {approx = true} : vector<2x8x1xf32> -> vector<2x8x1xf32>
    %119 = vector.broadcast %118 : vector<2x8x1xf32> to vector<2x8x16xf32>
    %120 = arith.mulf %115, %119 : vector<2x8x16xf32>
    %121 = arith.truncf %120 : vector<2x8x16xf32> to vector<2x8x16xbf16>
    "tpu.trace_start"() <{level = 10 : i32, message = "bqk,bkd->bqd"}> : () -> ()
    %cst_53 = arith.constant dense<0.000000e+00> : vector<2x8x8xf32>
    %122 = tpu.matmul %121, %109, %cst_53 {dimension_numbers = #tpu.dot_dimension_numbers<[2], [1], [1], [2], [0, 0, 0, 1, 1, 2], [0], [0]>} : vector<2x8x16xbf16>, vector<2x16x8xbf16>, vector<2x8x8xf32> -> vector<2x8x8xf32>
    "tpu.trace_stop"() : () -> ()
    %123 = vector.extract_strided_slice %104 {offsets = [0, 0, 8], sizes = [2, 8, 8], strides = [1, 1, 1]} : vector<2x8x32xbf16> to vector<2x8x8xbf16>
    %124 = vector.extract_strided_slice %106 {offsets = [0, 0, 8], sizes = [2, 16, 8], strides = [1, 1, 1]} : vector<2x16x32xbf16> to vector<2x16x8xbf16>
    %125 = vector.extract_strided_slice %28 {offsets = [0, 0, 8], sizes = [2, 16, 8], strides = [1, 1, 1]} : vector<2x16x32xbf16> to vector<2x16x8xbf16>
    "tpu.trace_start"() <{level = 10 : i32, message = "bqd,bkd->bqk"}> : () -> ()
    %cst_54 = arith.constant dense<0.000000e+00> : vector<2x8x16xf32>
    %126 = tpu.matmul %123, %124, %cst_54 {dimension_numbers = #tpu.dot_dimension_numbers<[2], [2], [1], [1], [0, 0, 0, 1, 1, 1], [0], [0]>} : vector<2x8x8xbf16>, vector<2x16x8xbf16>, vector<2x8x16xf32> -> vector<2x8x16xf32>
    "tpu.trace_stop"() : () -> ()
    %cst_55 = arith.constant dense<0xFF800000> : vector<2x8xf32>
    %127 = vector.multi_reduction <maximumf>, %126, %cst_55 [2] : vector<2x8x16xf32> to vector<2x8xf32>
    %128 = vector.shape_cast %127 : vector<2x8xf32> to vector<2x8x1xf32>
    %129 = vector.broadcast %128 : vector<2x8x1xf32> to vector<2x8x16xf32>
    %130 = arith.subf %126, %129 : vector<2x8x16xf32>
    %131 = math.exp %130 : vector<2x8x16xf32>
    %cst_56 = arith.constant dense<0.000000e+00> : vector<2x8xf32>
    %132 = vector.multi_reduction <add>, %131, %cst_56 [2] : vector<2x8x16xf32> to vector<2x8xf32>
    %133 = vector.shape_cast %132 : vector<2x8xf32> to vector<2x8x1xf32>
    %134 = tpu.reciprocal %133 {approx = true} : vector<2x8x1xf32> -> vector<2x8x1xf32>
    %135 = vector.broadcast %134 : vector<2x8x1xf32> to vector<2x8x16xf32>
    %136 = arith.mulf %131, %135 : vector<2x8x16xf32>
    %137 = arith.truncf %136 : vector<2x8x16xf32> to vector<2x8x16xbf16>
    "tpu.trace_start"() <{level = 10 : i32, message = "bqk,bkd->bqd"}> : () -> ()
    %cst_57 = arith.constant dense<0.000000e+00> : vector<2x8x8xf32>
    %138 = tpu.matmul %137, %125, %cst_57 {dimension_numbers = #tpu.dot_dimension_numbers<[2], [1], [1], [2], [0, 0, 0, 1, 1, 2], [0], [0]>} : vector<2x8x16xbf16>, vector<2x16x8xbf16>, vector<2x8x8xf32> -> vector<2x8x8xf32>
    "tpu.trace_stop"() : () -> ()
    %139 = vector.extract_strided_slice %104 {offsets = [0, 0, 16], sizes = [2, 8, 8], strides = [1, 1, 1]} : vector<2x8x32xbf16> to vector<2x8x8xbf16>
    %140 = vector.extract_strided_slice %106 {offsets = [0, 0, 16], sizes = [2, 16, 8], strides = [1, 1, 1]} : vector<2x16x32xbf16> to vector<2x16x8xbf16>
    %141 = vector.extract_strided_slice %28 {offsets = [0, 0, 16], sizes = [2, 16, 8], strides = [1, 1, 1]} : vector<2x16x32xbf16> to vector<2x16x8xbf16>
    "tpu.trace_start"() <{level = 10 : i32, message = "bqd,bkd->bqk"}> : () -> ()
    %cst_58 = arith.constant dense<0.000000e+00> : vector<2x8x16xf32>
    %142 = tpu.matmul %139, %140, %cst_58 {dimension_numbers = #tpu.dot_dimension_numbers<[2], [2], [1], [1], [0, 0, 0, 1, 1, 1], [0], [0]>} : vector<2x8x8xbf16>, vector<2x16x8xbf16>, vector<2x8x16xf32> -> vector<2x8x16xf32>
    "tpu.trace_stop"() : () -> ()
    %cst_59 = arith.constant dense<0xFF800000> : vector<2x8xf32>
    %143 = vector.multi_reduction <maximumf>, %142, %cst_59 [2] : vector<2x8x16xf32> to vector<2x8xf32>
    %144 = vector.shape_cast %143 : vector<2x8xf32> to vector<2x8x1xf32>
    %145 = vector.broadcast %144 : vector<2x8x1xf32> to vector<2x8x16xf32>
    %146 = arith.subf %142, %145 : vector<2x8x16xf32>
    %147 = math.exp %146 : vector<2x8x16xf32>
    %cst_60 = arith.constant dense<0.000000e+00> : vector<2x8xf32>
    %148 = vector.multi_reduction <add>, %147, %cst_60 [2] : vector<2x8x16xf32> to vector<2x8xf32>
    %149 = vector.shape_cast %148 : vector<2x8xf32> to vector<2x8x1xf32>
    %150 = tpu.reciprocal %149 {approx = true} : vector<2x8x1xf32> -> vector<2x8x1xf32>
    %151 = vector.broadcast %150 : vector<2x8x1xf32> to vector<2x8x16xf32>
    %152 = arith.mulf %147, %151 : vector<2x8x16xf32>
    %153 = arith.truncf %152 : vector<2x8x16xf32> to vector<2x8x16xbf16>
    "tpu.trace_start"() <{level = 10 : i32, message = "bqk,bkd->bqd"}> : () -> ()
    %cst_61 = arith.constant dense<0.000000e+00> : vector<2x8x8xf32>
    %154 = tpu.matmul %153, %141, %cst_61 {dimension_numbers = #tpu.dot_dimension_numbers<[2], [1], [1], [2], [0, 0, 0, 1, 1, 2], [0], [0]>} : vector<2x8x16xbf16>, vector<2x16x8xbf16>, vector<2x8x8xf32> -> vector<2x8x8xf32>
    "tpu.trace_stop"() : () -> ()
    %155 = vector.extract_strided_slice %104 {offsets = [0, 0, 24], sizes = [2, 8, 8], strides = [1, 1, 1]} : vector<2x8x32xbf16> to vector<2x8x8xbf16>
    %156 = vector.extract_strided_slice %106 {offsets = [0, 0, 24], sizes = [2, 16, 8], strides = [1, 1, 1]} : vector<2x16x32xbf16> to vector<2x16x8xbf16>
    %157 = vector.extract_strided_slice %28 {offsets = [0, 0, 24], sizes = [2, 16, 8], strides = [1, 1, 1]} : vector<2x16x32xbf16> to vector<2x16x8xbf16>
    "tpu.trace_start"() <{level = 10 : i32, message = "bqd,bkd->bqk"}> : () -> ()
    %cst_62 = arith.constant dense<0.000000e+00> : vector<2x8x16xf32>
    %158 = tpu.matmul %155, %156, %cst_62 {dimension_numbers = #tpu.dot_dimension_numbers<[2], [2], [1], [1], [0, 0, 0, 1, 1, 1], [0], [0]>} : vector<2x8x8xbf16>, vector<2x16x8xbf16>, vector<2x8x16xf32> -> vector<2x8x16xf32>
    "tpu.trace_stop"() : () -> ()
    %cst_63 = arith.constant dense<0xFF800000> : vector<2x8xf32>
    %159 = vector.multi_reduction <maximumf>, %158, %cst_63 [2] : vector<2x8x16xf32> to vector<2x8xf32>
    %160 = vector.shape_cast %159 : vector<2x8xf32> to vector<2x8x1xf32>
    %161 = vector.broadcast %160 : vector<2x8x1xf32> to vector<2x8x16xf32>
    %162 = arith.subf %158, %161 : vector<2x8x16xf32>
    %163 = math.exp %162 : vector<2x8x16xf32>
    %cst_64 = arith.constant dense<0.000000e+00> : vector<2x8xf32>
    %164 = vector.multi_reduction <add>, %163, %cst_64 [2] : vector<2x8x16xf32> to vector<2x8xf32>
    %165 = vector.shape_cast %164 : vector<2x8xf32> to vector<2x8x1xf32>
    %166 = tpu.reciprocal %165 {approx = true} : vector<2x8x1xf32> -> vector<2x8x1xf32>
    %167 = vector.broadcast %166 : vector<2x8x1xf32> to vector<2x8x16xf32>
    %168 = arith.mulf %163, %167 : vector<2x8x16xf32>
    %169 = arith.truncf %168 : vector<2x8x16xf32> to vector<2x8x16xbf16>
    "tpu.trace_start"() <{level = 10 : i32, message = "bqk,bkd->bqd"}> : () -> ()
    %cst_65 = arith.constant dense<0.000000e+00> : vector<2x8x8xf32>
    %170 = tpu.matmul %169, %157, %cst_65 {dimension_numbers = #tpu.dot_dimension_numbers<[2], [1], [1], [2], [0, 0, 0, 1, 1, 2], [0], [0]>} : vector<2x8x16xbf16>, vector<2x16x8xbf16>, vector<2x8x8xf32> -> vector<2x8x8xf32>
    "tpu.trace_stop"() : () -> ()
    %171 = tpu.concatenate %122, %138, %154, %170 in 2 : vector<2x8x8xf32>, vector<2x8x8xf32>, vector<2x8x8xf32>, vector<2x8x8xf32> -> vector<2x8x32xf32>
    %c0_66 = arith.constant 0 : index
    %c0_67 = arith.constant 0 : index
    %c0_68 = arith.constant 0 : index
    %172 = vector.load %arg15[%c0_66, %c0_67, %c0_68] : memref<2x8x32xf32, #tpu.memory_space<vmem>>, vector<2x8x32xf32>
    tpu.vector_store %arg15[%c0_66, %c0_67, %c0_68], %171 {strides = array<i32>} : memref<2x8x32xf32, #tpu.memory_space<vmem>>, vector<2x8x32xf32>,
    return
  }
  func.func @transform_0(%arg0: i32) -> (i32, i32, i32) {
    %c0_i32 = arith.constant 0 : i32
    %c0_i32_0 = arith.constant 0 : i32
    %c0_i32_1 = arith.constant 0 : i32
    return %arg0, %c0_i32, %c0_i32_0 : i32, i32, i32
  }
  func.func @transform_1(%arg0: i32) -> (i32, i32, i32) {
    %c0_i32 = arith.constant 0 : i32
    %c0_i32_0 = arith.constant 0 : i32
    %c0_i32_1 = arith.constant 0 : i32
    return %arg0, %c0_i32, %c0_i32_0 : i32, i32, i32
  }
  func.func @transform_2(%arg0: i32) -> (i32, i32) {
    %c0_i32 = arith.constant 0 : i32
    %c0_i32_0 = arith.constant 0 : i32
    %c0_i32_1 = arith.constant 0 : i32
    return %c0_i32, %c0_i32_0 : i32, i32
  }
  func.func @transform_3(%arg0: i32) -> (i32, i32) {
    %c0_i32 = arith.constant 0 : i32
    %c0_i32_0 = arith.constant 0 : i32
    %c0_i32_1 = arith.constant 0 : i32
    return %c0_i32, %c0_i32_0 : i32, i32
  }
  func.func @transform_4(%arg0: i32) -> (i32, i32) {
    %c0_i32 = arith.constant 0 : i32
    %c0_i32_0 = arith.constant 0 : i32
    %c0_i32_1 = arith.constant 0 : i32
    return %c0_i32, %c0_i32_0 : i32, i32
  }
  func.func @transform_5(%arg0: i32) -> (i32, i32) {
    %c0_i32 = arith.constant 0 : i32
    %c0_i32_0 = arith.constant 0 : i32
    %c0_i32_1 = arith.constant 0 : i32
    return %c0_i32, %c0_i32_0 : i32, i32
  }
  func.func @transform_6(%arg0: i32) -> (i32, i32) {
    %c0_i32 = arith.constant 0 : i32
    %c0_i32_0 = arith.constant 0 : i32
    %c0_i32_1 = arith.constant 0 : i32
    return %c0_i32, %c0_i32_0 : i32, i32
  }
  func.func @transform_7(%arg0: i32) -> (i32, i32) {
    %c0_i32 = arith.constant 0 : i32
    %c0_i32_0 = arith.constant 0 : i32
    %c0_i32_1 = arith.constant 0 : i32
    return %c0_i32, %c0_i32_0 : i32, i32
  }
  func.func @transform_8(%arg0: i32) -> (i32, i32) {
    %c0_i32 = arith.constant 0 : i32
    %c0_i32_0 = arith.constant 0 : i32
    %c0_i32_1 = arith.constant 0 : i32
    return %c0_i32, %c0_i32_0 : i32, i32
  }
  func.func @transform_9(%arg0: i32) -> (i32, i32) {
    %c0_i32 = arith.constant 0 : i32
    %c0_i32_0 = arith.constant 0 : i32
    %c0_i32_1 = arith.constant 0 : i32
    return %c0_i32, %c0_i32_0 : i32, i32
  }
  func.func @transform_10(%arg0: i32) -> (i32, i32) {
    %c0_i32 = arith.constant 0 : i32
    %c0_i32_0 = arith.constant 0 : i32
    %c0_i32_1 = arith.constant 0 : i32
    return %c0_i32, %c0_i32_0 : i32, i32
  }
  func.func @transform_11(%arg0: i32) -> (i32, i32) {
    %c0_i32 = arith.constant 0 : i32
    %c0_i32_0 = arith.constant 0 : i32
    %c0_i32_1 = arith.constant 0 : i32
    return %c0_i32, %c0_i32_0 : i32, i32
  }
  func.func @transform_12(%arg0: i32) -> (i32, i32) {
    %c0_i32 = arith.constant 0 : i32
    %c0_i32_0 = arith.constant 0 : i32
    %c0_i32_1 = arith.constant 0 : i32
    return %c0_i32, %c0_i32_0 : i32, i32
  }
  func.func @transform_13(%arg0: i32) -> (i32, i32) {
    %c0_i32 = arith.constant 0 : i32
    %c0_i32_0 = arith.constant 0 : i32
    %c0_i32_1 = arith.constant 0 : i32
    return %c0_i32, %c0_i32_0 : i32, i32
  }
  func.func @transform_14(%arg0: i32) -> (i32, i32, i32) {
    %c0_i32 = arith.constant 0 : i32
    %c0_i32_0 = arith.constant 0 : i32
    %c0_i32_1 = arith.constant 0 : i32
    return %arg0, %c0_i32, %c0_i32_0 : i32, i32, i32
  }
}

</mosaic_0001>

<llo_original>
// kernel: tpu_custom_call.1
$region0: #{tpu_custom_call.1}
  #allocation0 [shape = 'u32[]', space=smem, size = 0x4, offset = 0x4, fixed_abs, tag = 'smem constant byte address 0x4 - core index']
  #allocation1 [shape = 'u32[144,128]{1,0:T(1,128)}', space=vmem, size = 0x12000, scoped, tag = 'internal scratch']
  %s0 = inlined_call_operand.hbm [shape: bf16[2,8,32], index: 0, kind: input, shape index: {}]
  %s1 = inlined_call_operand.hbm [shape: bf16[2,16,32], index: 1, kind: input, shape index: {}]
  %s2 = inlined_call_operand.hbm [shape: bf16[32,32], index: 2, kind: input, shape index: {}]
  %s3 = inlined_call_operand.vmem [shape: f32[1,32], index: 3, kind: input, shape index: {}]
  %s4 = inlined_call_operand.hbm [shape: bf16[32,32], index: 4, kind: input, shape index: {}]
  %s5 = inlined_call_operand.vmem [shape: f32[1,32], index: 5, kind: input, shape index: {}]
  %s6 = inlined_call_operand.vmem [shape: bf16[32,32], index: 6, kind: input, shape index: {}]
  %s7 = inlined_call_operand.hbm [shape: f32[1,32], index: 7, kind: input, shape index: {}]
  %s8 = inlined_call_operand.hbm [shape: bf16[32,32], index: 8, kind: input, shape index: {}]
  %s9 = inlined_call_operand.hbm [shape: f32[1,32], index: 9, kind: input, shape index: {}]
  %s10 = inlined_call_operand.vmem [shape: bf16[32,32], index: 10, kind: input, shape index: {}]
  %s11 = inlined_call_operand.vmem [shape: f32[1,32], index: 11, kind: input, shape index: {}]
  %s12 = inlined_call_operand.vmem [shape: f32[1,32], index: 12, kind: input, shape index: {}]
  %s13 = inlined_call_operand.vmem [shape: f32[1,32], index: 13, kind: input, shape index: {}]
  %s14 = inlined_call_operand.hbm [shape: f32[2,8,32], index: 14, kind: output, shape index: {}]
  %s15 = sld [smem:[#allocation0]]
  $region94: #{tpu_custom_call.1} parent=0
    _
  %s17 = ssub.s32 1, %s15
  %s18 = scalar_select 0, %s17, %s15
  $region1: #{tpu_custom_call.1} parent=0
    #allocation2 [shape = 'u8[4096]{0}', space=vmem, size = 0x1000, scoped, tag = 'input window, operand 0, single buffered']
    #allocation3 [shape = 's32[1]{0}', space=sflag, size = 0x4, scoped, tag = 'scoped memory for tpu_custom_call.1']
    #allocation4 [shape = 's32[1]{0}', space=sflag, size = 0x4, scoped, tag = 'scoped memory for tpu_custom_call.1']
    #allocation5 [shape = 'u8[8192]{0}', space=vmem, size = 0x2000, scoped, tag = 'input window, operand 1, single buffered']
    #allocation6 [shape = 's32[1]{0}', space=sflag, size = 0x4, scoped, tag = 'scoped memory for tpu_custom_call.1']
    #allocation7 [shape = 'u8[8192]{0}', space=vmem, size = 0x2000, scoped, tag = 'input window, operand 2, single buffered']
    #allocation8 [shape = 'u8[8192]{0}', space=vmem, size = 0x2000, scoped, tag = 'input window, operand 4, single buffered']
    #allocation9 [shape = 's32[1]{0}', space=sflag, size = 0x4, scoped, tag = 'scoped memory for tpu_custom_call.1']
    #allocation10 [shape = 'u8[512]{0}', space=vmem, size = 0x400, scoped, tag = 'input window, operand 7, single buffered']
    #allocation11 [shape = 'u8[8192]{0}', space=vmem, size = 0x2000, scoped, tag = 'input window, operand 8, single buffered']
    #allocation12 [shape = 's32[1]{0}', space=sflag, size = 0x4, scoped, tag = 'scoped memory for tpu_custom_call.1']
    #allocation13 [shape = 'u8[512]{0}', space=vmem, size = 0x400, scoped, tag = 'input window, operand 9, single buffered']
    #allocation14 [shape = 'u8[8192]{0}', space=vmem, size = 0x2000, scoped, tag = 'output window, operand 0, single buffered']
    %19 = vsyncpa [#allocation3], 0
    %20 = vsyncpa [#allocation6], 0
    %21 = vsyncpa [#allocation9], 0
    %22 = vsyncpa [#allocation12], 0
    %23 = vsyncpa [#allocation4], 0
    // Predicated region
    $region2: #{tpu_custom_call.1} parent=1 // pred_check
      _
    $region3: #{tpu_custom_call.1} parent=1 // pred_check_branch
      %25 = sbr.rel (0) target = $region5
    $region4: #{tpu_custom_call.1} parent=1 // pred_region
      %s27 = ssub.s32 128, 128
      %28 = vsyncadd [#allocation3], %s27
      %s29 = sshll.u32 [#allocation2], 4
      %s30 = int_to_ptr.vmem [resolvable:$true] %s29
      %35 = dma.hbm_to_vmem [thread:$0]  %s0, 128, %s30, [#allocation3], 64, 64, 4
    $region5: #{tpu_custom_call.1} parent=1 // pred_fallthru
      _
    // Predicated region
    $region6: #{tpu_custom_call.1} parent=1 // pred_check
      _
    $region7: #{tpu_custom_call.1} parent=1 // pred_check_branch
      %37 = sbr.rel (0) target = $region9
    $region8: #{tpu_custom_call.1} parent=1 // pred_region
      %s39 = ssub.s32 256, 256
      %40 = vsyncadd [#allocation6], %s39
      %s41 = sshll.u32 [#allocation5], 4
      %s42 = int_to_ptr.vmem [resolvable:$true] %s41
      %47 = dma.hbm_to_vmem [thread:$0]  %s1, 256, %s42, [#allocation6], 64, 64, 4
    $region9: #{tpu_custom_call.1} parent=1 // pred_fallthru
      _
    // Predicated region
    $region10: #{tpu_custom_call.1} parent=1 // pred_check
      _
    $region11: #{tpu_custom_call.1} parent=1 // pred_check_branch
      %49 = sbr.rel (0) target = $region13
    $region12: #{tpu_custom_call.1} parent=1 // pred_region
      %s51 = ssub.s32 256, 256
      %52 = vsyncadd [#allocation6], %s51
      %s53 = sshll.u32 [#allocation7], 4
      %s54 = int_to_ptr.vmem [resolvable:$true] %s53
      %59 = dma.hbm_to_vmem [thread:$0]  %s2, 256, %s54, [#allocation6], 64, 64, 4
    $region13: #{tpu_custom_call.1} parent=1 // pred_fallthru
      _
    // Predicated region
    $region14: #{tpu_custom_call.1} parent=1 // pred_check
      _
    $region15: #{tpu_custom_call.1} parent=1 // pred_check_branch
      %61 = sbr.rel (0) target = $region17
    $region16: #{tpu_custom_call.1} parent=1 // pred_region
      _
    $region17: #{tpu_custom_call.1} parent=1 // pred_fallthru
      _
    // Predicated region
    $region18: #{tpu_custom_call.1} parent=1 // pred_check
      _
    $region19: #{tpu_custom_call.1} parent=1 // pred_check_branch
      %63 = sbr.rel (0) target = $region21
    $region20: #{tpu_custom_call.1} parent=1 // pred_region
      %s65 = ssub.s32 256, 256
      %66 = vsyncadd [#allocation9], %s65
      %s67 = sshll.u32 [#allocation8], 4
      %s68 = int_to_ptr.vmem [resolvable:$true] %s67
      %73 = dma.hbm_to_vmem [thread:$0]  %s4, 256, %s68, [#allocation9], 64, 64, 4
    $region21: #{tpu_custom_call.1} parent=1 // pred_fallthru
      _
    // Predicated region
    $region22: #{tpu_custom_call.1} parent=1 // pred_check
      _
    $region23: #{tpu_custom_call.1} parent=1 // pred_check_branch
      %75 = sbr.rel (0) target = $region25
    $region24: #{tpu_custom_call.1} parent=1 // pred_region
      _
    $region25: #{tpu_custom_call.1} parent=1 // pred_fallthru
      _
    // Predicated region
    $region26: #{tpu_custom_call.1} parent=1 // pred_check
      _
    $region27: #{tpu_custom_call.1} parent=1 // pred_check_branch
      %77 = sbr.rel (0) target = $region29
    $region28: #{tpu_custom_call.1} parent=1 // pred_region
      _
    $region29: #{tpu_custom_call.1} parent=1 // pred_fallthru
      _
    // Predicated region
    $region30: #{tpu_custom_call.1} parent=1 // pred_check
      _
    $region31: #{tpu_custom_call.1} parent=1 // pred_check_branch
      %79 = sbr.rel (0) target = $region33
    $region32: #{tpu_custom_call.1} parent=1 // pred_region
      %s81 = ssub.s32 16, 16
      %82 = vsyncadd [#allocation9], %s81
      %s84 = sshll.u32 [#allocation10], 4
      %s85 = int_to_ptr.vmem [resolvable:$true] %s84
      %87 = dma.hbm_to_vmem [thread:$0]  %s7, 16, %s85, [#allocation9]
    $region33: #{tpu_custom_call.1} parent=1 // pred_fallthru
      _
    // Predicated region
    $region34: #{tpu_custom_call.1} parent=1 // pred_check
      _
    $region35: #{tpu_custom_call.1} parent=1 // pred_check_branch
      %89 = sbr.rel (0) target = $region37
    $region36: #{tpu_custom_call.1} parent=1 // pred_region
      %s91 = ssub.s32 256, 256
      %92 = vsyncadd [#allocation12], %s91
      %s93 = sshll.u32 [#allocation11], 4
      %s94 = int_to_ptr.vmem [resolvable:$true] %s93
      %99 = dma.hbm_to_vmem [thread:$0]  %s8, 256, %s94, [#allocation12], 64, 64, 4
    $region37: #{tpu_custom_call.1} parent=1 // pred_fallthru
      _
    // Predicated region
    $region38: #{tpu_custom_call.1} parent=1 // pred_check
      _
    $region39: #{tpu_custom_call.1} parent=1 // pred_check_branch
      %101 = sbr.rel (0) target = $region41
    $region40: #{tpu_custom_call.1} parent=1 // pred_region
      %s103 = ssub.s32 16, 16
      %104 = vsyncadd [#allocation12], %s103
      %s106 = sshll.u32 [#allocation13], 4
      %s107 = int_to_ptr.vmem [resolvable:$true] %s106
      %109 = dma.hbm_to_vmem [thread:$0]  %s9, 16, %s107, [#allocation12]
    $region41: #{tpu_custom_call.1} parent=1 // pred_fallthru
      _
    // Predicated region
    $region42: #{tpu_custom_call.1} parent=1 // pred_check
      _
    $region43: #{tpu_custom_call.1} parent=1 // pred_check_branch
      %111 = sbr.rel (0) target = $region45
    $region44: #{tpu_custom_call.1} parent=1 // pred_region
      _
    $region45: #{tpu_custom_call.1} parent=1 // pred_fallthru
      _
    // Predicated region
    $region46: #{tpu_custom_call.1} parent=1 // pred_check
      _
    $region47: #{tpu_custom_call.1} parent=1 // pred_check_branch
      %113 = sbr.rel (0) target = $region49
    $region48: #{tpu_custom_call.1} parent=1 // pred_region
      _
    $region49: #{tpu_custom_call.1} parent=1 // pred_fallthru
      _
    // Predicated region
    $region50: #{tpu_custom_call.1} parent=1 // pred_check
      _
    $region51: #{tpu_custom_call.1} parent=1 // pred_check_branch
      %115 = sbr.rel (0) target = $region53
    $region52: #{tpu_custom_call.1} parent=1 // pred_region
      _
    $region53: #{tpu_custom_call.1} parent=1 // pred_fallthru
      _
    // Predicated region
    $region54: #{tpu_custom_call.1} parent=1 // pred_check
      _
    $region55: #{tpu_custom_call.1} parent=1 // pred_check_branch
      %117 = sbr.rel (0) target = $region57
    $region56: #{tpu_custom_call.1} parent=1 // pred_region
      _
    $region57: #{tpu_custom_call.1} parent=1 // pred_fallthru
      _
    // Predicated region
    $region58: #{tpu_custom_call.1} parent=1 // pred_check
      _
    $region59: #{tpu_custom_call.1} parent=1 // pred_check_branch
      %119 = sbr.rel (0) target = $region61
    $region60: #{tpu_custom_call.1} parent=1 // pred_region
      %120 = dma.done [#allocation3], 128
    $region61: #{tpu_custom_call.1} parent=1 // pred_fallthru
      _
    // Predicated region
    $region62: #{tpu_custom_call.1} parent=1 // pred_check
      _
    $region63: #{tpu_custom_call.1} parent=1 // pred_check_branch
      %122 = sbr.rel (0) target = $region65
    $region64: #{tpu_custom_call.1} parent=1 // pred_region
      %123 = dma.done [#allocation6], 256
    $region65: #{tpu_custom_call.1} parent=1 // pred_fallthru
      _
    // Predicated region
    $region66: #{tpu_custom_call.1} parent=1 // pred_check
      _
    $region67: #{tpu_custom_call.1} parent=1 // pred_check_branch
      %125 = sbr.rel (0) target = $region69
    $region68: #{tpu_custom_call.1} parent=1 // pred_region
      %126 = dma.done [#allocation6], 256
    $region69: #{tpu_custom_call.1} parent=1 // pred_fallthru
      _
    // Predicated region
    $region70: #{tpu_custom_call.1} parent=1 // pred_check
      _
    $region71: #{tpu_custom_call.1} parent=1 // pred_check_branch
      %128 = sbr.rel (0) target = $region73
    $region72: #{tpu_custom_call.1} parent=1 // pred_region
      %129 = dma.done [#allocation9], 256
    $region73: #{tpu_custom_call.1} parent=1 // pred_fallthru
      _
    // Predicated region
    $region74: #{tpu_custom_call.1} parent=1 // pred_check
      _
    $region75: #{tpu_custom_call.1} parent=1 // pred_check_branch
      %131 = sbr.rel (0) target = $region77
    $region76: #{tpu_custom_call.1} parent=1 // pred_region
      %132 = dma.done [#allocation9], 16
    $region77: #{tpu_custom_call.1} parent=1 // pred_fallthru
      _
    // Predicated region
    $region78: #{tpu_custom_call.1} parent=1 // pred_check
      _
    $region79: #{tpu_custom_call.1} parent=1 // pred_check_branch
      %134 = sbr.rel (0) target = $region81
    $region80: #{tpu_custom_call.1} parent=1 // pred_region
      %135 = dma.done [#allocation12], 256
    $region81: #{tpu_custom_call.1} parent=1 // pred_fallthru
      _
    // Predicated region
    $region82: #{tpu_custom_call.1} parent=1 // pred_check
      _
    $region83: #{tpu_custom_call.1} parent=1 // pred_check_branch
      %137 = sbr.rel (0) target = $region85
    $region84: #{tpu_custom_call.1} parent=1 // pred_region
      %138 = dma.done [#allocation12], 16
    $region85: #{tpu_custom_call.1} parent=1 // pred_fallthru
      _
    %v140 = vld [vmem:[%s3] sm:$0x1]
    %v141 = vld [vmem:[%s5] sm:$0x1]
    %v142 = vld [vmem:[#allocation10] sm:$0x1]
    %v143 = vld [vmem:[#allocation13] sm:$0x1]
    %v144 = vld [vmem:[%s11] sm:$0x1]
    %v145 = vld [vmem:[%s12] sm:$0x1]
    %v146 = vld [vmem:[%s13] sm:$0x1]
    %v147 = vld [vmem:[#allocation2] sm:$0xf]
    %v148 = vld [vmem:[#allocation2 + $0x4] sm:$0xf]
    %v149 = vld [vmem:[#allocation5] sm:$0xf]
    %v150 = vld [vmem:[#allocation5 + $0x4] sm:$0xf]
    %v151 = vld [vmem:[#allocation5 + $0x8] sm:$0xf]
    %v152 = vld [vmem:[#allocation5 + $0xc] sm:$0xf]
    %v153 = vld [vmem:[#allocation7] sm:$0xf]
    %v154 = vld [vmem:[#allocation7 + $0x4] sm:$0xf]
    %v155 = vld [vmem:[#allocation7 + $0x8] sm:$0xf]
    %v156 = vld [vmem:[#allocation7 + $0xc] sm:$0xf]
    %v158 = vlaneseq
    %v159 = vshrl.u32 %v158, 7
    %v160 = vsub.s32 0, %v159
    %v161 = vrot.slane %v140, %v160
    %v165 = vunpack.c.l.b16 %v147
    %v166 = vunpack.c.l.b16 %v148
    %v167 = vpack.c.b16 %v166, %v165
    %v172 = vunpack.c.l.b16 %v153
    %v173 = vunpack.c.l.b16 %v154
    %v174 = vunpack.c.l.b16 %v155
    %v175 = vunpack.c.l.b16 %v156
    %v176 = vpack.c.b16 %v173, %v172
    %v177 = vpack.c.b16 %v175, %v174
    %vm180 = vcmask 261120
    %v182 = vsel %vm180, %v167, 0
    %184 = vmatprep.subr.bf16.mxu0 0
    %185 = vmatpush1.bf16.msra.mxu0 %v176
    %186 = vmatprep.subr.bf16.mxu0 0
    %187 = vmatpush1.bf16.msra.mxu0 %v177
    %188 = vmatprep.subr.bf16.mxu0 0
    %189 = vmatpush1.bf16.msra.mxu0 0
    %190 = vmatprep.subr.bf16.mxu0 0
    %191 = vmatpush1.bf16.msra.mxu0 0
    %192 = vmatprep.subr.bf16.mxu0 0
    %193 = vmatpush1.bf16.msra.mxu0 0
    %194 = vmatprep.subr.bf16.mxu0 0
    %195 = vmatpush1.bf16.msra.mxu0 0
    %196 = vmatprep.subr.bf16.mxu0 0
    %197 = vmatpush1.bf16.msra.mxu0 0
    %198 = vmatprep.subr.bf16.mxu0 0
    %199 = vmatpush1.bf16.msra.mxu0 0
    %200 = vmatprep.subr.bf16.mxu0 0
    %201 = vmatpush1.bf16.msra.mxu0 0
    %202 = vmatprep.subr.bf16.mxu0 0
    %203 = vmatpush1.bf16.msra.mxu0 0
    %204 = vmatprep.subr.bf16.mxu0 0
    %205 = vmatpush1.bf16.msra.mxu0 0
    %206 = vmatprep.subr.bf16.mxu0 0
    %207 = vmatpush1.bf16.msra.mxu0 0
    %208 = vmatprep.subr.bf16.mxu0 0
    %209 = vmatpush1.bf16.msra.mxu0 0
    %210 = vmatprep.subr.bf16.mxu0 0
    %211 = vmatpush1.bf16.msra.mxu0 0
    %212 = vmatprep.subr.bf16.mxu0 0
    %213 = vmatpush1.bf16.msra.mxu0 0
    %214 = vmatprep.subr.bf16.mxu0 0
    %215 = vmatpush1.bf16.msra.mxu0 0
    %216 = vmatprep.mubr.bf16.mxu0 0
    %217 = vmatmul.mubr.bf16.gmra.mrb[0].mxu0 %v182
    %v218 = vpop.f32.mrb[0].mxu0
    %v219 = vadd.f32 %v161, %v218
    %v220 = vpop.f32.mrb[0].mxu0
    %v221 = vpop.f32.mrb[0].mxu0
    %v222 = vadd.f32 %v161, %v221
    %v223 = vpop.f32.mrb[0].mxu0
    %224 = vdwg.mxu0
    %v225 = vld [vmem:[#allocation8] sm:$0xf]
    %v226 = vld [vmem:[#allocation8 + $0x4] sm:$0xf]
    %v227 = vld [vmem:[#allocation8 + $0x8] sm:$0xf]
    %v228 = vld [vmem:[#allocation8 + $0xc] sm:$0xf]
    %v230 = vlaneseq
    %v231 = vshrl.u32 %v230, 7
    %v232 = vsub.s32 0, %v231
    %v233 = vrot.slane %v141, %v232
    %v239 = vunpack.c.l.b16 %v149
    %v240 = vunpack.c.l.b16 %v150
    %v241 = vunpack.c.l.b16 %v151
    %v242 = vunpack.c.l.b16 %v152
    %v243 = vpack.c.b16 %v240, %v239
    %v244 = vpack.c.b16 %v242, %v241
    %v249 = vunpack.c.l.b16 %v225
    %v250 = vunpack.c.l.b16 %v226
    %v251 = vunpack.c.l.b16 %v227
    %v252 = vunpack.c.l.b16 %v228
    %v253 = vpack.c.b16 %v250, %v249
    %v254 = vpack.c.b16 %v252, %v251
    %v258 = vsel %vm180, %v243, 0
    %v261 = vsel %vm180, %v244, 0
    %263 = vmatprep.subr.bf16.mxu0 0
    %264 = vmatpush1.bf16.msra.mxu0 %v253
    %265 = vmatprep.subr.bf16.mxu0 0
    %266 = vmatpush1.bf16.msra.mxu0 %v254
    %267 = vmatprep.subr.bf16.mxu0 0
    %268 = vmatpush1.bf16.msra.mxu0 0
    %269 = vmatprep.subr.bf16.mxu0 0
    %270 = vmatpush1.bf16.msra.mxu0 0
    %271 = vmatprep.subr.bf16.mxu0 0
    %272 = vmatpush1.bf16.msra.mxu0 0
    %273 = vmatprep.subr.bf16.mxu0 0
    %274 = vmatpush1.bf16.msra.mxu0 0
    %275 = vmatprep.subr.bf16.mxu0 0
    %276 = vmatpush1.bf16.msra.mxu0 0
    %277 = vmatprep.subr.bf16.mxu0 0
    %278 = vmatpush1.bf16.msra.mxu0 0
    %279 = vmatprep.subr.bf16.mxu0 0
    %280 = vmatpush1.bf16.msra.mxu0 0
    %281 = vmatprep.subr.bf16.mxu0 0
    %282 = vmatpush1.bf16.msra.mxu0 0
    %283 = vmatprep.subr.bf16.mxu0 0
    %284 = vmatpush1.bf16.msra.mxu0 0
    %285 = vmatprep.subr.bf16.mxu0 0
    %286 = vmatpush1.bf16.msra.mxu0 0
    %287 = vmatprep.subr.bf16.mxu0 0
    %288 = vmatpush1.bf16.msra.mxu0 0
    %289 = vmatprep.subr.bf16.mxu0 0
    %290 = vmatpush1.bf16.msra.mxu0 0
    %291 = vmatprep.subr.bf16.mxu0 0
    %292 = vmatpush1.bf16.msra.mxu0 0
    %293 = vmatprep.subr.bf16.mxu0 0
    %294 = vmatpush1.bf16.msra.mxu0 0
    %295 = vmatprep.mubr.bf16.mxu0 0
    %296 = vmatmul.mubr.bf16.gmra.mrb[0].mxu0 %v258
    %v297 = vpop.f32.mrb[0].mxu0
    %v298 = vadd.f32 %v233, %v297
    %v299 = vpop.f32.mrb[0].mxu0
    %v300 = vpop.f32.mrb[0].mxu0
    %v301 = vadd.f32 %v233, %v300
    %v302 = vpop.f32.mrb[0].mxu0
    %303 = vmatprep.mubr.bf16.mxu0 0
    %304 = vmatmul.mubr.bf16.gmra.mrb[0].mxu0 %v261
    %v305 = vpop.f32.mrb[0].mxu0
    %v306 = vadd.f32 %v233, %v305
    %v307 = vpop.f32.mrb[0].mxu0
    %v308 = vpop.f32.mrb[0].mxu0
    %v309 = vadd.f32 %v233, %v308
    %v310 = vpop.f32.mrb[0].mxu0
    %311 = vdwg.mxu0
    %v312 = vld [vmem:[%s6] sm:$0xf]
    %v313 = vld [vmem:[%s6 + $0x4] sm:$0xf]
    %v314 = vld [vmem:[%s6 + $0x8] sm:$0xf]
    %v315 = vld [vmem:[%s6 + $0xc] sm:$0xf]
    %v317 = vlaneseq
    %v318 = vshrl.u32 %v317, 7
    %v319 = vsub.s32 0, %v318
    %v320 = vrot.slane %v142, %v319
    %v326 = vunpack.c.l.b16 %v312
    %v327 = vunpack.c.l.b16 %v313
    %v328 = vunpack.c.l.b16 %v314
    %v329 = vunpack.c.l.b16 %v315
    %v330 = vpack.c.b16 %v327, %v326
    %v331 = vpack.c.b16 %v329, %v328
    %334 = vmatprep.subr.bf16.mxu0 0
    %335 = vmatpush1.bf16.msra.mxu0 %v330
    %336 = vmatprep.subr.bf16.mxu0 0
    %337 = vmatpush1.bf16.msra.mxu0 %v331
    %338 = vmatprep.subr.bf16.mxu0 0
    %339 = vmatpush1.bf16.msra.mxu0 0
    %340 = vmatprep.subr.bf16.mxu0 0
    %341 = vmatpush1.bf16.msra.mxu0 0
    %342 = vmatprep.subr.bf16.mxu0 0
    %343 = vmatpush1.bf16.msra.mxu0 0
    %344 = vmatprep.subr.bf16.mxu0 0
    %345 = vmatpush1.bf16.msra.mxu0 0
    %346 = vmatprep.subr.bf16.mxu0 0
    %347 = vmatpush1.bf16.msra.mxu0 0
    %348 = vmatprep.subr.bf16.mxu0 0
    %349 = vmatpush1.bf16.msra.mxu0 0
    %350 = vmatprep.subr.bf16.mxu0 0
    %351 = vmatpush1.bf16.msra.mxu0 0
    %352 = vmatprep.subr.bf16.mxu0 0
    %353 = vmatpush1.bf16.msra.mxu0 0
    %354 = vmatprep.subr.bf16.mxu0 0
    %355 = vmatpush1.bf16.msra.mxu0 0
    %356 = vmatprep.subr.bf16.mxu0 0
    %357 = vmatpush1.bf16.msra.mxu0 0
    %358 = vmatprep.subr.bf16.mxu0 0
    %359 = vmatpush1.bf16.msra.mxu0 0
    %360 = vmatprep.subr.bf16.mxu0 0
    %361 = vmatpush1.bf16.msra.mxu0 0
    %362 = vmatprep.subr.bf16.mxu0 0
    %363 = vmatpush1.bf16.msra.mxu0 0
    %364 = vmatprep.subr.bf16.mxu0 0
    %365 = vmatpush1.bf16.msra.mxu0 0
    %366 = vmatprep.mubr.bf16.mxu0 0
    %367 = vmatmul.mubr.bf16.gmra.mrb[0].mxu0 %v258
    %v368 = vpop.f32.mrb[0].mxu0
    %v369 = vadd.f32 %v320, %v368
    %v370 = vpop.f32.mrb[0].mxu0
    %v371 = vpop.f32.mrb[0].mxu0
    %v372 = vadd.f32 %v320, %v371
    %v373 = vpop.f32.mrb[0].mxu0
    %374 = vmatprep.mubr.bf16.mxu0 0
    %375 = vmatmul.mubr.bf16.gmra.mrb[0].mxu0 %v261
    %v376 = vpop.f32.mrb[0].mxu0
    %v377 = vadd.f32 %v320, %v376
    %v378 = vpop.f32.mrb[0].mxu0
    %v379 = vpop.f32.mrb[0].mxu0
    %v380 = vadd.f32 %v320, %v379
    %v381 = vpop.f32.mrb[0].mxu0
    %382 = vdwg.mxu0
    %v383 = vpack.c.bf16 %v222, %v219
    %v385 = vunpack.c.l.b16 %v383
    %v386 = vunpack.c.h.b16 %v383
    %v387 = vpack.c.b16 %v385, %v385
    %v388 = vpack.c.b16 %v386, %v386
    %v389 = vpack.c.bf16 %v301, %v298
    %v390 = vpack.c.bf16 %v309, %v306
    %v391 = vpack.c.bf16 %v372, %v369
    %v392 = vpack.c.bf16 %v380, %v377
    %v394 = vsel %vm180, %v387, 0
    %v397 = vsel %vm180, %v389, 0
    %399 = vmatprep.subr.bf16.mxu0 0
    %400 = vmatpush1.bf16.xpose.msra.mxu0 %v397
    %401 = vmatprep.subr.bf16.mxu0 0
    %402 = vmatpush1.bf16.xpose.msra.mxu0 0
    %403 = vmatprep.subr.bf16.mxu0 0
    %404 = vmatpush1.bf16.xpose.msra.mxu0 0
    %405 = vmatprep.subr.bf16.mxu0 0
    %406 = vmatpush1.bf16.xpose.msra.mxu0 0
    %407 = vmatprep.subr.bf16.mxu0 0
    %408 = vmatpush1.bf16.xpose.msra.mxu0 0
    %409 = vmatprep.subr.bf16.mxu0 0
    %410 = vmatpush1.bf16.xpose.msra.mxu0 0
    %411 = vmatprep.subr.bf16.mxu0 0
    %412 = vmatpush1.bf16.xpose.msra.mxu0 0
    %413 = vmatprep.subr.bf16.mxu0 0
    %414 = vmatpush1.bf16.xpose.msra.mxu0 0
    %415 = vmatprep.subr.bf16.mxu0 0
    %416 = vmatpush1.bf16.xpose.msra.mxu0 0
    %417 = vmatprep.subr.bf16.mxu0 0
    %418 = vmatpush1.bf16.xpose.msra.mxu0 0
    %419 = vmatprep.subr.bf16.mxu0 0
    %420 = vmatpush1.bf16.xpose.msra.mxu0 0
    %421 = vmatprep.subr.bf16.mxu0 0
    %422 = vmatpush1.bf16.xpose.msra.mxu0 0
    %423 = vmatprep.subr.bf16.mxu0 0
    %424 = vmatpush1.bf16.xpose.msra.mxu0 0
    %425 = vmatprep.subr.bf16.mxu0 0
    %426 = vmatpush1.bf16.xpose.msra.mxu0 0
    %427 = vmatprep.subr.bf16.mxu0 0
    %428 = vmatpush1.bf16.xpose.msra.mxu0 0
    %429 = vmatprep.subr.bf16.mxu0 0
    %430 = vmatpush1.bf16.xpose.msra.mxu0 0
    %431 = vmatprep.mubr.bf16.mxu0 0
    %432 = vmatmul.mubr.bf16.gmra.mrb[0].mxu0 %v394
    %v433 = vpop.f32.mrb[0].mxu0
    %v434 = vadd.f32 0.0, %v433
    %v435 = vpop.f32.mrb[0].mxu0
    %v436 = vpop.f32.mrb[0].mxu0
    %v437 = vpop.f32.mrb[0].mxu0
    %438 = vdwg.mxu0
    %v440 = vsel %vm180, %v388, 0
    %v443 = vsel %vm180, %v390, 0
    %445 = vmatprep.subr.bf16.mxu0 0
    %446 = vmatpush1.bf16.xpose.msra.mxu0 %v443
    %447 = vmatprep.subr.bf16.mxu0 0
    %448 = vmatpush1.bf16.xpose.msra.mxu0 0
    %449 = vmatprep.subr.bf16.mxu0 0
    %450 = vmatpush1.bf16.xpose.msra.mxu0 0
    %451 = vmatprep.subr.bf16.mxu0 0
    %452 = vmatpush1.bf16.xpose.msra.mxu0 0
    %453 = vmatprep.subr.bf16.mxu0 0
    %454 = vmatpush1.bf16.xpose.msra.mxu0 0
    %455 = vmatprep.subr.bf16.mxu0 0
    %456 = vmatpush1.bf16.xpose.msra.mxu0 0
    %457 = vmatprep.subr.bf16.mxu0 0
    %458 = vmatpush1.bf16.xpose.msra.mxu0 0
    %459 = vmatprep.subr.bf16.mxu0 0
    %460 = vmatpush1.bf16.xpose.msra.mxu0 0
    %461 = vmatprep.subr.bf16.mxu0 0
    %462 = vmatpush1.bf16.xpose.msra.mxu0 0
    %463 = vmatprep.subr.bf16.mxu0 0
    %464 = vmatpush1.bf16.xpose.msra.mxu0 0
    %465 = vmatprep.subr.bf16.mxu0 0
    %466 = vmatpush1.bf16.xpose.msra.mxu0 0
    %467 = vmatprep.subr.bf16.mxu0 0
    %468 = vmatpush1.bf16.xpose.msra.mxu0 0
    %469 = vmatprep.subr.bf16.mxu0 0
    %470 = vmatpush1.bf16.xpose.msra.mxu0 0
    %471 = vmatprep.subr.bf16.mxu0 0
    %472 = vmatpush1.bf16.xpose.msra.mxu0 0
    %473 = vmatprep.subr.bf16.mxu0 0
    %474 = vmatpush1.bf16.xpose.msra.mxu0 0
    %475 = vmatprep.subr.bf16.mxu0 0
    %476 = vmatpush1.bf16.xpose.msra.mxu0 0
    %477 = vmatprep.mubr.bf16.mxu0 0
    %478 = vmatmul.mubr.bf16.gmra.mrb[0].mxu0 %v440
    %v479 = vpop.f32.mrb[0].mxu0
    %v480 = vadd.f32 0.0, %v479
    %v481 = vpop.f32.mrb[0].mxu0
    %v482 = vpop.f32.mrb[0].mxu0
    %v483 = vpop.f32.mrb[0].mxu0
    %484 = vdwg.mxu0
    %vm485 = vcmask 130048
    %v486 = vsel %vm485, %v434, -inf
    %487 = vmax.xlane.f32.xlu0 %v486
    %v488 = vpop.xlane.xlu0 %487
    %v489 = vsel %vm485, %v480, -inf
    %490 = vmax.xlane.f32.xlu0 %v489
    %v491 = vpop.xlane.xlu0 %490
    %v492 = vsub.f32 %v434, %v488
    %v493 = vsub.f32 %v480, %v491
    %v494 = vmul.f32 %v492, 1.442695
    %v495 = vpow.pop %v494
    %v496 = vmul.f32 %v493, 1.442695
    %v497 = vpow.pop %v496
    %v498 = vsel %vm485, %v495, 0.0
    %499 = vadd.xlane.f32.xlu0 %v498
    %v500 = vpop.xlane.xlu0 %499
    %v501 = vsel %vm485, %v497, 0.0
    %502 = vadd.xlane.f32.xlu0 %v501
    %v503 = vpop.xlane.xlu0 %502
    %v504 = vrcp.pop %v500
    %v505 = vrcp.pop %v503
    %v506 = vmul.f32 %v495, %v504
    %v507 = vmul.f32 %v497, %v505
    %v508 = vpack.c.bf16 %v506, %v506
    %v509 = vpack.c.bf16 %v507, %v507
    %v511 = vsel %vm485, %v508, 0
    %513 = vmatprep.subr.bf16.mxu0 0
    %514 = vmatpush1.bf16.msra.mxu0 %v391
    %515 = vmatprep.subr.bf16.mxu0 0
    %516 = vmatpush1.bf16.msra.mxu0 0
    %517 = vmatprep.subr.bf16.mxu0 0
    %518 = vmatpush1.bf16.msra.mxu0 0
    %519 = vmatprep.subr.bf16.mxu0 0
    %520 = vmatpush1.bf16.msra.mxu0 0
    %521 = vmatprep.subr.bf16.mxu0 0
    %522 = vmatpush1.bf16.msra.mxu0 0
    %523 = vmatprep.subr.bf16.mxu0 0
    %524 = vmatpush1.bf16.msra.mxu0 0
    %525 = vmatprep.subr.bf16.mxu0 0
    %526 = vmatpush1.bf16.msra.mxu0 0
    %527 = vmatprep.subr.bf16.mxu0 0
    %528 = vmatpush1.bf16.msra.mxu0 0
    %529 = vmatprep.subr.bf16.mxu0 0
    %530 = vmatpush1.bf16.msra.mxu0 0
    %531 = vmatprep.subr.bf16.mxu0 0
    %532 = vmatpush1.bf16.msra.mxu0 0
    %533 = vmatprep.subr.bf16.mxu0 0
    %534 = vmatpush1.bf16.msra.mxu0 0
    %535 = vmatprep.subr.bf16.mxu0 0
    %536 = vmatpush1.bf16.msra.mxu0 0
    %537 = vmatprep.subr.bf16.mxu0 0
    %538 = vmatpush1.bf16.msra.mxu0 0
    %539 = vmatprep.subr.bf16.mxu0 0
    %540 = vmatpush1.bf16.msra.mxu0 0
    %541 = vmatprep.subr.bf16.mxu0 0
    %542 = vmatpush1.bf16.msra.mxu0 0
    %543 = vmatprep.subr.bf16.mxu0 0
    %544 = vmatpush1.bf16.msra.mxu0 0
    %545 = vmatprep.mubr.bf16.mxu0 0
    %546 = vmatmul.mubr.bf16.gmra.mrb[0].mxu0 %v511
    %v547 = vpop.f32.mrb[0].mxu0
    %v548 = vadd.f32 0.0, %v547
    %v549 = vpop.f32.mrb[0].mxu0
    %v550 = vpop.f32.mrb[0].mxu0
    %v551 = vpop.f32.mrb[0].mxu0
    %552 = vdwg.mxu0
    %v554 = vsel %vm485, %v509, 0
    %556 = vmatprep.subr.bf16.mxu0 0
    %557 = vmatpush1.bf16.msra.mxu0 %v392
    %558 = vmatprep.subr.bf16.mxu0 0
    %559 = vmatpush1.bf16.msra.mxu0 0
    %560 = vmatprep.subr.bf16.mxu0 0
    %561 = vmatpush1.bf16.msra.mxu0 0
    %562 = vmatprep.subr.bf16.mxu0 0
    %563 = vmatpush1.bf16.msra.mxu0 0
    %564 = vmatprep.subr.bf16.mxu0 0
    %565 = vmatpush1.bf16.msra.mxu0 0
    %566 = vmatprep.subr.bf16.mxu0 0
    %567 = vmatpush1.bf16.msra.mxu0 0
    %568 = vmatprep.subr.bf16.mxu0 0
    %569 = vmatpush1.bf16.msra.mxu0 0
    %570 = vmatprep.subr.bf16.mxu0 0
    %571 = vmatpush1.bf16.msra.mxu0 0
    %572 = vmatprep.subr.bf16.mxu0 0
    %573 = vmatpush1.bf16.msra.mxu0 0
    %574 = vmatprep.subr.bf16.mxu0 0
    %575 = vmatpush1.bf16.msra.mxu0 0
    %576 = vmatprep.subr.bf16.mxu0 0
    %577 = vmatpush1.bf16.msra.mxu0 0
    %578 = vmatprep.subr.bf16.mxu0 0
    %579 = vmatpush1.bf16.msra.mxu0 0
    %580 = vmatprep.subr.bf16.mxu0 0
    %581 = vmatpush1.bf16.msra.mxu0 0
    %582 = vmatprep.subr.bf16.mxu0 0
    %583 = vmatpush1.bf16.msra.mxu0 0
    %584 = vmatprep.subr.bf16.mxu0 0
    %585 = vmatpush1.bf16.msra.mxu0 0
    %586 = vmatprep.subr.bf16.mxu0 0
    %587 = vmatpush1.bf16.msra.mxu0 0
    %588 = vmatprep.mubr.bf16.mxu0 0
    %589 = vmatmul.mubr.bf16.gmra.mrb[0].mxu0 %v554
    %v590 = vpop.f32.mrb[0].mxu0
    %v591 = vadd.f32 0.0, %v590
    %v592 = vpop.f32.mrb[0].mxu0
    %v593 = vpop.f32.mrb[0].mxu0
    %v594 = vpop.f32.mrb[0].mxu0
    %595 = vdwg.mxu0
    %v596 = vpack.c.bf16 %v591, %v548
    %v597 = vld [vmem:[#allocation11] sm:$0xf]
    %v598 = vld [vmem:[#allocation11 + $0x4] sm:$0xf]
    %v599 = vld [vmem:[#allocation11 + $0x8] sm:$0xf]
    %v600 = vld [vmem:[#allocation11 + $0xc] sm:$0xf]
    %v602 = vlaneseq
    %v603 = vshrl.u32 %v602, 7
    %v604 = vsub.s32 0, %v603
    %v605 = vrot.slane %v143, %v604
    %v611 = vunpack.c.l.b16 %v597
    %v612 = vunpack.c.l.b16 %v598
    %v613 = vunpack.c.l.b16 %v599
    %v614 = vunpack.c.l.b16 %v600
    %v615 = vpack.c.b16 %v612, %v611
    %v616 = vpack.c.b16 %v614, %v613
    %v620 = vsel %vm180, %v596, 0
    %622 = vmatprep.subr.bf16.mxu0 0
    %623 = vmatpush1.bf16.msra.mxu0 %v615
    %624 = vmatprep.subr.bf16.mxu0 0
    %625 = vmatpush1.bf16.msra.mxu0 %v616
    %626 = vmatprep.subr.bf16.mxu0 0
    %627 = vmatpush1.bf16.msra.mxu0 0
    %628 = vmatprep.subr.bf16.mxu0 0
    %629 = vmatpush1.bf16.msra.mxu0 0
    %630 = vmatprep.subr.bf16.mxu0 0
    %631 = vmatpush1.bf16.msra.mxu0 0
    %632 = vmatprep.subr.bf16.mxu0 0
    %633 = vmatpush1.bf16.msra.mxu0 0
    %634 = vmatprep.subr.bf16.mxu0 0
    %635 = vmatpush1.bf16.msra.mxu0 0
    %636 = vmatprep.subr.bf16.mxu0 0
    %637 = vmatpush1.bf16.msra.mxu0 0
    %638 = vmatprep.subr.bf16.mxu0 0
    %639 = vmatpush1.bf16.msra.mxu0 0
    %640 = vmatprep.subr.bf16.mxu0 0
    %641 = vmatpush1.bf16.msra.mxu0 0
    %642 = vmatprep.subr.bf16.mxu0 0
    %643 = vmatpush1.bf16.msra.mxu0 0
    %644 = vmatprep.subr.bf16.mxu0 0
    %645 = vmatpush1.bf16.msra.mxu0 0
    %646 = vmatprep.subr.bf16.mxu0 0
    %647 = vmatpush1.bf16.msra.mxu0 0
    %648 = vmatprep.subr.bf16.mxu0 0
    %649 = vmatpush1.bf16.msra.mxu0 0
    %650 = vmatprep.subr.bf16.mxu0 0
    %651 = vmatpush1.bf16.msra.mxu0 0
    %652 = vmatprep.subr.bf16.mxu0 0
    %653 = vmatpush1.bf16.msra.mxu0 0
    %654 = vmatprep.mubr.bf16.mxu0 0
    %655 = vmatmul.mubr.bf16.gmra.mrb[0].mxu0 %v620
    %v656 = vpop.f32.mrb[0].mxu0
    %v657 = vadd.f32 %v605, %v656
    %v658 = vpop.f32.mrb[0].mxu0
    %v659 = vpop.f32.mrb[0].mxu0
    %v660 = vadd.f32 %v605, %v659
    %v661 = vpop.f32.mrb[0].mxu0
    %662 = vdwg.mxu0
    %v663 = vmax.f32 %v657, 0.0
    %v664 = vmax.f32 %v660, 0.0
    %v665 = vsel %vm180, %v663, 0.0
    %666 = vadd.xlane.f32.xlu0 %v665
    %v667 = vpop.xlane.xlu0 %666
    %v668 = vsel %vm180, %v664, 0.0
    %669 = vadd.xlane.f32.xlu0 %v668
    %v670 = vpop.xlane.xlu0 %669
    %v671 = vrcp.pop 32.0
    %v672 = vmul.f32 %v667, %v671
    %v673 = vmul.f32 %v670, %v671
    %v674 = vsub.f32 %v663, %v672
    %v675 = vsub.f32 %v664, %v673
    %v676 = vmul.f32 %v674, %v674
    %v677 = vmul.f32 %v675, %v675
    %v678 = vsel %vm180, %v676, 0.0
    %679 = vadd.xlane.f32.xlu0 %v678
    %v680 = vpop.xlane.xlu0 %679
    %v681 = vsel %vm180, %v677, 0.0
    %682 = vadd.xlane.f32.xlu0 %v681
    %v683 = vpop.xlane.xlu0 %682
    %v684 = vmul.f32 %v680, %v671
    %v685 = vmul.f32 %v683, %v671
    %v686 = vadd.f32 %v684, 1e-05
    %v687 = vadd.f32 %v685, 1e-05
    %v688 = vrsqrt.pop %v686
    %v689 = vrsqrt.pop %v687
    %v690 = vmul.f32 %v674, %v688
    %v691 = vmul.f32 %v675, %v689
    %v693 = vlaneseq
    %v694 = vshrl.u32 %v693, 7
    %v695 = vsub.s32 0, %v694
    %v696 = vrot.slane %v145, %v695
    %v698 = vmul.f32 %v690, %v696
    %v699 = vmul.f32 %v691, %v696
    %v701 = vlaneseq
    %v702 = vshrl.u32 %v701, 7
    %v703 = vsub.s32 0, %v702
    %v704 = vrot.slane %v146, %v703
    %v706 = vadd.f32 %v698, %v704
    %v707 = vadd.f32 %v699, %v704
    %v708 = vld [vmem:[%s10] sm:$0xf]
    %v709 = vld [vmem:[%s10 + $0x4] sm:$0xf]
    %v710 = vld [vmem:[%s10 + $0x8] sm:$0xf]
    %v711 = vld [vmem:[%s10 + $0xc] sm:$0xf]
    %v713 = vlaneseq
    %v714 = vshrl.u32 %v713, 7
    %v715 = vsub.s32 0, %v714
    %v716 = vrot.slane %v144, %v715
    %v722 = vunpack.c.l.b16 %v708
    %v723 = vunpack.c.l.b16 %v709
    %v724 = vunpack.c.l.b16 %v710
    %v725 = vunpack.c.l.b16 %v711
    %v726 = vpack.c.b16 %v723, %v722
    %v727 = vpack.c.b16 %v725, %v724
    %730 = vmatprep.subr.bf16.mxu0 0
    %731 = vmatpush1.bf16.msra.mxu0 %v726
    %732 = vmatprep.subr.bf16.mxu0 0
    %733 = vmatpush1.bf16.msra.mxu0 %v727
    %734 = vmatprep.subr.bf16.mxu0 0
    %735 = vmatpush1.bf16.msra.mxu0 0
    %736 = vmatprep.subr.bf16.mxu0 0
    %737 = vmatpush1.bf16.msra.mxu0 0
    %738 = vmatprep.subr.bf16.mxu0 0
    %739 = vmatpush1.bf16.msra.mxu0 0
    %740 = vmatprep.subr.bf16.mxu0 0
    %741 = vmatpush1.bf16.msra.mxu0 0
    %742 = vmatprep.subr.bf16.mxu0 0
    %743 = vmatpush1.bf16.msra.mxu0 0
    %744 = vmatprep.subr.bf16.mxu0 0
    %745 = vmatpush1.bf16.msra.mxu0 0
    %746 = vmatprep.subr.bf16.mxu0 0
    %747 = vmatpush1.bf16.msra.mxu0 0
    %748 = vmatprep.subr.bf16.mxu0 0
    %749 = vmatpush1.bf16.msra.mxu0 0
    %750 = vmatprep.subr.bf16.mxu0 0
    %751 = vmatpush1.bf16.msra.mxu0 0
    %752 = vmatprep.subr.bf16.mxu0 0
    %753 = vmatpush1.bf16.msra.mxu0 0
    %754 = vmatprep.subr.bf16.mxu0 0
    %755 = vmatpush1.bf16.msra.mxu0 0
    %756 = vmatprep.subr.bf16.mxu0 0
    %757 = vmatpush1.bf16.msra.mxu0 0
    %758 = vmatprep.subr.bf16.mxu0 0
    %759 = vmatpush1.bf16.msra.mxu0 0
    %760 = vmatprep.subr.bf16.mxu0 0
    %761 = vmatpush1.bf16.msra.mxu0 0
    %762 = vmatprep.mubr.bf16.mxu0 0
    %763 = vmatmul.mubr.bf16.gmra.mrb[0].mxu0 %v397
    %v764 = vpop.f32.mrb[0].mxu0
    %v765 = vadd.f32 %v716, %v764
    %v766 = vpop.f32.mrb[0].mxu0
    %v767 = vpop.f32.mrb[0].mxu0
    %v768 = vadd.f32 %v716, %v767
    %v769 = vpop.f32.mrb[0].mxu0
    %770 = vmatprep.mubr.bf16.mxu0 0
    %771 = vmatmul.mubr.bf16.gmra.mrb[0].mxu0 %v443
    %v772 = vpop.f32.mrb[0].mxu0
    %v773 = vadd.f32 %v716, %v772
    %v774 = vpop.f32.mrb[0].mxu0
    %v775 = vpop.f32.mrb[0].mxu0
    %v776 = vadd.f32 %v716, %v775
    %v777 = vpop.f32.mrb[0].mxu0
    %778 = vdwg.mxu0
    %v779 = vmax.f32 %v765, 0.0
    %v780 = vmax.f32 %v768, 0.0
    %v781 = vmax.f32 %v773, 0.0
    %v782 = vmax.f32 %v776, 0.0
    %v783 = vsel %vm180, %v779, 0.0
    %784 = vadd.xlane.f32.xlu0 %v783
    %v785 = vpop.xlane.xlu0 %784
    %v786 = vsel %vm180, %v780, 0.0
    %787 = vadd.xlane.f32.xlu0 %v786
    %v788 = vpop.xlane.xlu0 %787
    %v789 = vsel %vm180, %v781, 0.0
    %790 = vadd.xlane.f32.xlu0 %v789
    %v791 = vpop.xlane.xlu0 %790
    %v792 = vsel %vm180, %v782, 0.0
    %793 = vadd.xlane.f32.xlu0 %v792
    %v794 = vpop.xlane.xlu0 %793
    %v795 = vmul.f32 %v785, %v671
    %v796 = vmul.f32 %v788, %v671
    %v797 = vmul.f32 %v791, %v671
    %v798 = vmul.f32 %v794, %v671
    %v799 = vsub.f32 %v779, %v795
    %v800 = vsub.f32 %v780, %v796
    %v801 = vsub.f32 %v781, %v797
    %v802 = vsub.f32 %v782, %v798
    %v803 = vmul.f32 %v799, %v799
    %v804 = vmul.f32 %v800, %v800
    %v805 = vmul.f32 %v801, %v801
    %v806 = vmul.f32 %v802, %v802
    %v807 = vsel %vm180, %v803, 0.0
    %808 = vadd.xlane.f32.xlu0 %v807
    %v809 = vpop.xlane.xlu0 %808
    %v810 = vsel %vm180, %v804, 0.0
    %811 = vadd.xlane.f32.xlu0 %v810
    %v812 = vpop.xlane.xlu0 %811
    %v813 = vsel %vm180, %v805, 0.0
    %814 = vadd.xlane.f32.xlu0 %v813
    %v815 = vpop.xlane.xlu0 %814
    %v816 = vsel %vm180, %v806, 0.0
    %817 = vadd.xlane.f32.xlu0 %v816
    %v818 = vpop.xlane.xlu0 %817
    %v819 = vmul.f32 %v809, %v671
    %v820 = vmul.f32 %v812, %v671
    %v821 = vmul.f32 %v815, %v671
    %v822 = vmul.f32 %v818, %v671
    %v823 = vadd.f32 %v819, 1e-05
    %v824 = vadd.f32 %v820, 1e-05
    %v825 = vadd.f32 %v821, 1e-05
    %v826 = vadd.f32 %v822, 1e-05
    %v827 = vrsqrt.pop %v823
    %v828 = vrsqrt.pop %v824
    %v829 = vrsqrt.pop %v825
    %v830 = vrsqrt.pop %v826
    %v831 = vmul.f32 %v799, %v827
    %v832 = vmul.f32 %v800, %v828
    %v833 = vmul.f32 %v801, %v829
    %v834 = vmul.f32 %v802, %v830
    %v835 = vmul.f32 %v831, %v696
    %v836 = vmul.f32 %v832, %v696
    %v837 = vmul.f32 %v833, %v696
    %v838 = vmul.f32 %v834, %v696
    %v839 = vadd.f32 %v835, %v704
    %v840 = vadd.f32 %v836, %v704
    %v841 = vadd.f32 %v837, %v704
    %v842 = vadd.f32 %v838, %v704
    %v843 = vmul.f32 %v706, 0.35355338
    %v844 = vmul.f32 %v707, 0.35355338
    %v845 = vpack.c.bf16 %v844, %v843
    %v847 = vunpack.c.l.b16 %v845
    %v848 = vunpack.c.h.b16 %v845
    %v849 = vpack.c.b16 %v847, %v847
    %v850 = vpack.c.b16 %v848, %v848
    %v851 = vpack.c.bf16 %v840, %v839
    %v852 = vpack.c.bf16 %v842, %v841
    %vm853 = vcmask 64512
    %v855 = vsel %vm853, %v849, 0
    %v858 = vsel %vm853, %v851, 0
    %860 = vmatprep.subr.bf16.mxu0 0
    %861 = vmatpush1.bf16.xpose.msra.mxu0 %v858
    %862 = vmatprep.subr.bf16.mxu0 0
    %863 = vmatpush1.bf16.xpose.msra.mxu0 0
    %864 = vmatprep.subr.bf16.mxu0 0
    %865 = vmatpush1.bf16.xpose.msra.mxu0 0
    %866 = vmatprep.subr.bf16.mxu0 0
    %867 = vmatpush1.bf16.xpose.msra.mxu0 0
    %868 = vmatprep.subr.bf16.mxu0 0
    %869 = vmatpush1.bf16.xpose.msra.mxu0 0
    %870 = vmatprep.subr.bf16.mxu0 0
    %871 = vmatpush1.bf16.xpose.msra.mxu0 0
    %872 = vmatprep.subr.bf16.mxu0 0
    %873 = vmatpush1.bf16.xpose.msra.mxu0 0
    %874 = vmatprep.subr.bf16.mxu0 0
    %875 = vmatpush1.bf16.xpose.msra.mxu0 0
    %876 = vmatprep.subr.bf16.mxu0 0
    %877 = vmatpush1.bf16.xpose.msra.mxu0 0
    %878 = vmatprep.subr.bf16.mxu0 0
    %879 = vmatpush1.bf16.xpose.msra.mxu0 0
    %880 = vmatprep.subr.bf16.mxu0 0
    %881 = vmatpush1.bf16.xpose.msra.mxu0 0
    %882 = vmatprep.subr.bf16.mxu0 0
    %883 = vmatpush1.bf16.xpose.msra.mxu0 0
    %884 = vmatprep.subr.bf16.mxu0 0
    %885 = vmatpush1.bf16.xpose.msra.mxu0 0
    %886 = vmatprep.subr.bf16.mxu0 0
    %887 = vmatpush1.bf16.xpose.msra.mxu0 0
    %888 = vmatprep.subr.bf16.mxu0 0
    %889 = vmatpush1.bf16.xpose.msra.mxu0 0
    %890 = vmatprep.subr.bf16.mxu0 0
    %891 = vmatpush1.bf16.xpose.msra.mxu0 0
    %892 = vmatprep.mubr.bf16.mxu0 0
    %893 = vmatmul.mubr.bf16.gmra.mrb[0].mxu0 %v855
    %v894 = vpop.f32.mrb[0].mxu0
    %v895 = vadd.f32 0.0, %v894
    %v896 = vpop.f32.mrb[0].mxu0
    %v897 = vpop.f32.mrb[0].mxu0
    %v898 = vpop.f32.mrb[0].mxu0
    %899 = vdwg.mxu0
    %v901 = vsel %vm853, %v850, 0
    %v904 = vsel %vm853, %v852, 0
    %906 = vmatprep.subr.bf16.mxu0 0
    %907 = vmatpush1.bf16.xpose.msra.mxu0 %v904
    %908 = vmatprep.subr.bf16.mxu0 0
    %909 = vmatpush1.bf16.xpose.msra.mxu0 0
    %910 = vmatprep.subr.bf16.mxu0 0
    %911 = vmatpush1.bf16.xpose.msra.mxu0 0
    %912 = vmatprep.subr.bf16.mxu0 0
    %913 = vmatpush1.bf16.xpose.msra.mxu0 0
    %914 = vmatprep.subr.bf16.mxu0 0
    %915 = vmatpush1.bf16.xpose.msra.mxu0 0
    %916 = vmatprep.subr.bf16.mxu0 0
    %917 = vmatpush1.bf16.xpose.msra.mxu0 0
    %918 = vmatprep.subr.bf16.mxu0 0
    %919 = vmatpush1.bf16.xpose.msra.mxu0 0
    %920 = vmatprep.subr.bf16.mxu0 0
    %921 = vmatpush1.bf16.xpose.msra.mxu0 0
    %922 = vmatprep.subr.bf16.mxu0 0
    %923 = vmatpush1.bf16.xpose.msra.mxu0 0
    %924 = vmatprep.subr.bf16.mxu0 0
    %925 = vmatpush1.bf16.xpose.msra.mxu0 0
    %926 = vmatprep.subr.bf16.mxu0 0
    %927 = vmatpush1.bf16.xpose.msra.mxu0 0
    %928 = vmatprep.subr.bf16.mxu0 0
    %929 = vmatpush1.bf16.xpose.msra.mxu0 0
    %930 = vmatprep.subr.bf16.mxu0 0
    %931 = vmatpush1.bf16.xpose.msra.mxu0 0
    %932 = vmatprep.subr.bf16.mxu0 0
    %933 = vmatpush1.bf16.xpose.msra.mxu0 0
    %934 = vmatprep.subr.bf16.mxu0 0
    %935 = vmatpush1.bf16.xpose.msra.mxu0 0
    %936 = vmatprep.subr.bf16.mxu0 0
    %937 = vmatpush1.bf16.xpose.msra.mxu0 0
    %938 = vmatprep.mubr.bf16.mxu0 0
    %939 = vmatmul.mubr.bf16.gmra.mrb[0].mxu0 %v901
    %v940 = vpop.f32.mrb[0].mxu0
    %v941 = vadd.f32 0.0, %v940
    %v942 = vpop.f32.mrb[0].mxu0
    %v943 = vpop.f32.mrb[0].mxu0
    %v944 = vpop.f32.mrb[0].mxu0
    %945 = vdwg.mxu0
    %v946 = vsel %vm485, %v895, -inf
    %947 = vmax.xlane.f32.xlu0 %v946
    %v948 = vpop.xlane.xlu0 %947
    %v949 = vsel %vm485, %v941, -inf
    %950 = vmax.xlane.f32.xlu0 %v949
    %v951 = vpop.xlane.xlu0 %950
    %v952 = vsub.f32 %v895, %v948
    %v953 = vsub.f32 %v941, %v951
    %v954 = vmul.f32 %v952, 1.442695
    %v955 = vpow.pop %v954
    %v956 = vmul.f32 %v953, 1.442695
    %v957 = vpow.pop %v956
    %v958 = vsel %vm485, %v955, 0.0
    %959 = vadd.xlane.f32.xlu0 %v958
    %v960 = vpop.xlane.xlu0 %959
    %v961 = vsel %vm485, %v957, 0.0
    %962 = vadd.xlane.f32.xlu0 %v961
    %v963 = vpop.xlane.xlu0 %962
    %v964 = vrcp.pop %v960
    %v965 = vrcp.pop %v963
    %v966 = vmul.f32 %v955, %v964
    %v967 = vmul.f32 %v957, %v965
    %v968 = vpack.c.bf16 %v966, %v966
    %v969 = vpack.c.bf16 %v967, %v967
    %v971 = vsel %vm485, %v968, 0
    %973 = vmatprep.subr.bf16.mxu0 0
    %974 = vmatpush1.bf16.msra.mxu0 %v391
    %975 = vmatprep.subr.bf16.mxu0 0
    %976 = vmatpush1.bf16.msra.mxu0 0
    %977 = vmatprep.subr.bf16.mxu0 0
    %978 = vmatpush1.bf16.msra.mxu0 0
    %979 = vmatprep.subr.bf16.mxu0 0
    %980 = vmatpush1.bf16.msra.mxu0 0
    %981 = vmatprep.subr.bf16.mxu0 0
    %982 = vmatpush1.bf16.msra.mxu0 0
    %983 = vmatprep.subr.bf16.mxu0 0
    %984 = vmatpush1.bf16.msra.mxu0 0
    %985 = vmatprep.subr.bf16.mxu0 0
    %986 = vmatpush1.bf16.msra.mxu0 0
    %987 = vmatprep.subr.bf16.mxu0 0
    %988 = vmatpush1.bf16.msra.mxu0 0
    %989 = vmatprep.subr.bf16.mxu0 0
    %990 = vmatpush1.bf16.msra.mxu0 0
    %991 = vmatprep.subr.bf16.mxu0 0
    %992 = vmatpush1.bf16.msra.mxu0 0
    %993 = vmatprep.subr.bf16.mxu0 0
    %994 = vmatpush1.bf16.msra.mxu0 0
    %995 = vmatprep.subr.bf16.mxu0 0
    %996 = vmatpush1.bf16.msra.mxu0 0
    %997 = vmatprep.subr.bf16.mxu0 0
    %998 = vmatpush1.bf16.msra.mxu0 0
    %999 = vmatprep.subr.bf16.mxu0 0
    %1000 = vmatpush1.bf16.msra.mxu0 0
    %1001 = vmatprep.subr.bf16.mxu0 0
    %1002 = vmatpush1.bf16.msra.mxu0 0
    %1003 = vmatprep.subr.bf16.mxu0 0
    %1004 = vmatpush1.bf16.msra.mxu0 0
    %1005 = vmatprep.mubr.bf16.mxu0 0
    %1006 = vmatmul.mubr.bf16.gmra.mrb[0].mxu0 %v971
    %v1007 = vpop.f32.mrb[0].mxu0
    %v1008 = vadd.f32 0.0, %v1007
    %v1009 = vpop.f32.mrb[0].mxu0
    %v1010 = vpop.f32.mrb[0].mxu0
    %v1011 = vpop.f32.mrb[0].mxu0
    %1012 = vdwg.mxu0
    %v1014 = vsel %vm485, %v969, 0
    %1016 = vmatprep.subr.bf16.mxu0 0
    %1017 = vmatpush1.bf16.msra.mxu0 %v392
    %1018 = vmatprep.subr.bf16.mxu0 0
    %1019 = vmatpush1.bf16.msra.mxu0 0
    %1020 = vmatprep.subr.bf16.mxu0 0
    %1021 = vmatpush1.bf16.msra.mxu0 0
    %1022 = vmatprep.subr.bf16.mxu0 0
    %1023 = vmatpush1.bf16.msra.mxu0 0
    %1024 = vmatprep.subr.bf16.mxu0 0
    %1025 = vmatpush1.bf16.msra.mxu0 0
    %1026 = vmatprep.subr.bf16.mxu0 0
    %1027 = vmatpush1.bf16.msra.mxu0 0
    %1028 = vmatprep.subr.bf16.mxu0 0
    %1029 = vmatpush1.bf16.msra.mxu0 0
    %1030 = vmatprep.subr.bf16.mxu0 0
    %1031 = vmatpush1.bf16.msra.mxu0 0
    %1032 = vmatprep.subr.bf16.mxu0 0
    %1033 = vmatpush1.bf16.msra.mxu0 0
    %1034 = vmatprep.subr.bf16.mxu0 0
    %1035 = vmatpush1.bf16.msra.mxu0 0
    %1036 = vmatprep.subr.bf16.mxu0 0
    %1037 = vmatpush1.bf16.msra.mxu0 0
    %1038 = vmatprep.subr.bf16.mxu0 0
    %1039 = vmatpush1.bf16.msra.mxu0 0
    %1040 = vmatprep.subr.bf16.mxu0 0
    %1041 = vmatpush1.bf16.msra.mxu0 0
    %1042 = vmatprep.subr.bf16.mxu0 0
    %1043 = vmatpush1.bf16.msra.mxu0 0
    %1044 = vmatprep.subr.bf16.mxu0 0
    %1045 = vmatpush1.bf16.msra.mxu0 0
    %1046 = vmatprep.subr.bf16.mxu0 0
    %1047 = vmatpush1.bf16.msra.mxu0 0
    %1048 = vmatprep.mubr.bf16.mxu0 0
    %1049 = vmatmul.mubr.bf16.gmra.mrb[0].mxu0 %v1014
    %v1050 = vpop.f32.mrb[0].mxu0
    %v1051 = vadd.f32 0.0, %v1050
    %v1052 = vpop.f32.mrb[0].mxu0
    %v1053 = vpop.f32.mrb[0].mxu0
    %v1054 = vpop.f32.mrb[0].mxu0
    %1055 = vdwg.mxu0
    %1056 = vrot.lane.b32.xlu0 %v849, 120
    %v1057 = vpop.permute.xlu0 %1056
    %1059 = vrot.lane.b32.xlu0 %v851, 120
    %v1060 = vpop.permute.xlu0 %1059
    %v1062 = vsel %vm853, %v1057, 0
    %v1065 = vsel %vm853, %v1060, 0
    %1067 = vmatprep.subr.bf16.mxu0 0
    %1068 = vmatpush1.bf16.xpose.msra.mxu0 %v1065
    %1069 = vmatprep.subr.bf16.mxu0 0
    %1070 = vmatpush1.bf16.xpose.msra.mxu0 0
    %1071 = vmatprep.subr.bf16.mxu0 0
    %1072 = vmatpush1.bf16.xpose.msra.mxu0 0
    %1073 = vmatprep.subr.bf16.mxu0 0
    %1074 = vmatpush1.bf16.xpose.msra.mxu0 0
    %1075 = vmatprep.subr.bf16.mxu0 0
    %1076 = vmatpush1.bf16.xpose.msra.mxu0 0
    %1077 = vmatprep.subr.bf16.mxu0 0
    %1078 = vmatpush1.bf16.xpose.msra.mxu0 0
    %1079 = vmatprep.subr.bf16.mxu0 0
    %1080 = vmatpush1.bf16.xpose.msra.mxu0 0
    %1081 = vmatprep.subr.bf16.mxu0 0
    %1082 = vmatpush1.bf16.xpose.msra.mxu0 0
    %1083 = vmatprep.subr.bf16.mxu0 0
    %1084 = vmatpush1.bf16.xpose.msra.mxu0 0
    %1085 = vmatprep.subr.bf16.mxu0 0
    %1086 = vmatpush1.bf16.xpose.msra.mxu0 0
    %1087 = vmatprep.subr.bf16.mxu0 0
    %1088 = vmatpush1.bf16.xpose.msra.mxu0 0
    %1089 = vmatprep.subr.bf16.mxu0 0
    %1090 = vmatpush1.bf16.xpose.msra.mxu0 0
    %1091 = vmatprep.subr.bf16.mxu0 0
    %1092 = vmatpush1.bf16.xpose.msra.mxu0 0
    %1093 = vmatprep.subr.bf16.mxu0 0
    %1094 = vmatpush1.bf16.xpose.msra.mxu0 0
    %1095 = vmatprep.subr.bf16.mxu0 0
    %1096 = vmatpush1.bf16.xpose.msra.mxu0 0
    %1097 = vmatprep.subr.bf16.mxu0 0
    %1098 = vmatpush1.bf16.xpose.msra.mxu0 0
    %1099 = vmatprep.mubr.bf16.mxu0 0
    %1100 = vmatmul.mubr.bf16.gmra.mrb[0].mxu0 %v1062
    %v1101 = vpop.f32.mrb[0].mxu0
    %v1102 = vadd.f32 0.0, %v1101
    %v1103 = vpop.f32.mrb[0].mxu0
    %v1104 = vpop.f32.mrb[0].mxu0
    %v1105 = vpop.f32.mrb[0].mxu0
    %1106 = vdwg.mxu0
    %1107 = vrot.lane.b32.xlu0 %v850, 120
    %v1108 = vpop.permute.xlu0 %1107
    %1110 = vrot.lane.b32.xlu0 %v852, 120
    %v1111 = vpop.permute.xlu0 %1110
    %v1113 = vsel %vm853, %v1108, 0
    %v1116 = vsel %vm853, %v1111, 0
    %1118 = vmatprep.subr.bf16.mxu0 0
    %1119 = vmatpush1.bf16.xpose.msra.mxu0 %v1116
    %1120 = vmatprep.subr.bf16.mxu0 0
    %1121 = vmatpush1.bf16.xpose.msra.mxu0 0
    %1122 = vmatprep.subr.bf16.mxu0 0
    %1123 = vmatpush1.bf16.xpose.msra.mxu0 0
    %1124 = vmatprep.subr.bf16.mxu0 0
    %1125 = vmatpush1.bf16.xpose.msra.mxu0 0
    %1126 = vmatprep.subr.bf16.mxu0 0
    %1127 = vmatpush1.bf16.xpose.msra.mxu0 0
    %1128 = vmatprep.subr.bf16.mxu0 0
    %1129 = vmatpush1.bf16.xpose.msra.mxu0 0
    %1130 = vmatprep.subr.bf16.mxu0 0
    %1131 = vmatpush1.bf16.xpose.msra.mxu0 0
    %1132 = vmatprep.subr.bf16.mxu0 0
    %1133 = vmatpush1.bf16.xpose.msra.mxu0 0
    %1134 = vmatprep.subr.bf16.mxu0 0
    %1135 = vmatpush1.bf16.xpose.msra.mxu0 0
    %1136 = vmatprep.subr.bf16.mxu0 0
    %1137 = vmatpush1.bf16.xpose.msra.mxu0 0
    %1138 = vmatprep.subr.bf16.mxu0 0
    %1139 = vmatpush1.bf16.xpose.msra.mxu0 0
    %1140 = vmatprep.subr.bf16.mxu0 0
    %1141 = vmatpush1.bf16.xpose.msra.mxu0 0
    %1142 = vmatprep.subr.bf16.mxu0 0
    %1143 = vmatpush1.bf16.xpose.msra.mxu0 0
    %1144 = vmatprep.subr.bf16.mxu0 0
    %1145 = vmatpush1.bf16.xpose.msra.mxu0 0
    %1146 = vmatprep.subr.bf16.mxu0 0
    %1147 = vmatpush1.bf16.xpose.msra.mxu0 0
    %1148 = vmatprep.subr.bf16.mxu0 0
    %1149 = vmatpush1.bf16.xpose.msra.mxu0 0
    %1150 = vmatprep.mubr.bf16.mxu0 0
    %1151 = vmatmul.mubr.bf16.gmra.mrb[0].mxu0 %v1113
    %v1152 = vpop.f32.mrb[0].mxu0
    %v1153 = vadd.f32 0.0, %v1152
    %v1154 = vpop.f32.mrb[0].mxu0
    %v1155 = vpop.f32.mrb[0].mxu0
    %v1156 = vpop.f32.mrb[0].mxu0
    %1157 = vdwg.mxu0
    %v1158 = vsel %vm485, %v1102, -inf
    %1159 = vmax.xlane.f32.xlu0 %v1158
    %v1160 = vpop.xlane.xlu0 %1159
    %v1161 = vsel %vm485, %v1153, -inf
    %1162 = vmax.xlane.f32.xlu0 %v1161
    %v1163 = vpop.xlane.xlu0 %1162
    %v1164 = vsub.f32 %v1102, %v1160
    %v1165 = vsub.f32 %v1153, %v1163
    %v1166 = vmul.f32 %v1164, 1.442695
    %v1167 = vpow.pop %v1166
    %v1168 = vmul.f32 %v1165, 1.442695
    %v1169 = vpow.pop %v1168
    %v1170 = vsel %vm485, %v1167, 0.0
    %1171 = vadd.xlane.f32.xlu0 %v1170
    %v1172 = vpop.xlane.xlu0 %1171
    %v1173 = vsel %vm485, %v1169, 0.0
    %1174 = vadd.xlane.f32.xlu0 %v1173
    %v1175 = vpop.xlane.xlu0 %1174
    %v1176 = vrcp.pop %v1172
    %v1177 = vrcp.pop %v1175
    %v1178 = vmul.f32 %v1167, %v1176
    %v1179 = vmul.f32 %v1169, %v1177
    %v1180 = vpack.c.bf16 %v1178, %v1178
    %v1181 = vpack.c.bf16 %v1179, %v1179
    %1183 = vrot.lane.b32.xlu0 %v391, 120
    %v1184 = vpop.permute.xlu0 %1183
    %v1187 = vsel %vm485, %v1180, 0
    %1189 = vmatprep.subr.bf16.mxu0 0
    %1190 = vmatpush1.bf16.msra.mxu0 %v1184
    %1191 = vmatprep.subr.bf16.mxu0 0
    %1192 = vmatpush1.bf16.msra.mxu0 0
    %1193 = vmatprep.subr.bf16.mxu0 0
    %1194 = vmatpush1.bf16.msra.mxu0 0
    %1195 = vmatprep.subr.bf16.mxu0 0
    %1196 = vmatpush1.bf16.msra.mxu0 0
    %1197 = vmatprep.subr.bf16.mxu0 0
    %1198 = vmatpush1.bf16.msra.mxu0 0
    %1199 = vmatprep.subr.bf16.mxu0 0
    %1200 = vmatpush1.bf16.msra.mxu0 0
    %1201 = vmatprep.subr.bf16.mxu0 0
    %1202 = vmatpush1.bf16.msra.mxu0 0
    %1203 = vmatprep.subr.bf16.mxu0 0
    %1204 = vmatpush1.bf16.msra.mxu0 0
    %1205 = vmatprep.subr.bf16.mxu0 0
    %1206 = vmatpush1.bf16.msra.mxu0 0
    %1207 = vmatprep.subr.bf16.mxu0 0
    %1208 = vmatpush1.bf16.msra.mxu0 0
    %1209 = vmatprep.subr.bf16.mxu0 0
    %1210 = vmatpush1.bf16.msra.mxu0 0
    %1211 = vmatprep.subr.bf16.mxu0 0
    %1212 = vmatpush1.bf16.msra.mxu0 0
    %1213 = vmatprep.subr.bf16.mxu0 0
    %1214 = vmatpush1.bf16.msra.mxu0 0
    %1215 = vmatprep.subr.bf16.mxu0 0
    %1216 = vmatpush1.bf16.msra.mxu0 0
    %1217 = vmatprep.subr.bf16.mxu0 0
    %1218 = vmatpush1.bf16.msra.mxu0 0
    %1219 = vmatprep.subr.bf16.mxu0 0
    %1220 = vmatpush1.bf16.msra.mxu0 0
    %1221 = vmatprep.mubr.bf16.mxu0 0
    %1222 = vmatmul.mubr.bf16.gmra.mrb[0].mxu0 %v1187
    %v1223 = vpop.f32.mrb[0].mxu0
    %v1224 = vadd.f32 0.0, %v1223
    %v1225 = vpop.f32.mrb[0].mxu0
    %v1226 = vpop.f32.mrb[0].mxu0
    %v1227 = vpop.f32.mrb[0].mxu0
    %1228 = vdwg.mxu0
    %1230 = vrot.lane.b32.xlu0 %v392, 120
    %v1231 = vpop.permute.xlu0 %1230
    %v1234 = vsel %vm485, %v1181, 0
    %1236 = vmatprep.subr.bf16.mxu0 0
    %1237 = vmatpush1.bf16.msra.mxu0 %v1231
    %1238 = vmatprep.subr.bf16.mxu0 0
    %1239 = vmatpush1.bf16.msra.mxu0 0
    %1240 = vmatprep.subr.bf16.mxu0 0
    %1241 = vmatpush1.bf16.msra.mxu0 0
    %1242 = vmatprep.subr.bf16.mxu0 0
    %1243 = vmatpush1.bf16.msra.mxu0 0
    %1244 = vmatprep.subr.bf16.mxu0 0
    %1245 = vmatpush1.bf16.msra.mxu0 0
    %1246 = vmatprep.subr.bf16.mxu0 0
    %1247 = vmatpush1.bf16.msra.mxu0 0
    %1248 = vmatprep.subr.bf16.mxu0 0
    %1249 = vmatpush1.bf16.msra.mxu0 0
    %1250 = vmatprep.subr.bf16.mxu0 0
    %1251 = vmatpush1.bf16.msra.mxu0 0
    %1252 = vmatprep.subr.bf16.mxu0 0
    %1253 = vmatpush1.bf16.msra.mxu0 0
    %1254 = vmatprep.subr.bf16.mxu0 0
    %1255 = vmatpush1.bf16.msra.mxu0 0
    %1256 = vmatprep.subr.bf16.mxu0 0
    %1257 = vmatpush1.bf16.msra.mxu0 0
    %1258 = vmatprep.subr.bf16.mxu0 0
    %1259 = vmatpush1.bf16.msra.mxu0 0
    %1260 = vmatprep.subr.bf16.mxu0 0
    %1261 = vmatpush1.bf16.msra.mxu0 0
    %1262 = vmatprep.subr.bf16.mxu0 0
    %1263 = vmatpush1.bf16.msra.mxu0 0
    %1264 = vmatprep.subr.bf16.mxu0 0
    %1265 = vmatpush1.bf16.msra.mxu0 0
    %1266 = vmatprep.subr.bf16.mxu0 0
    %1267 = vmatpush1.bf16.msra.mxu0 0
    %1268 = vmatprep.mubr.bf16.mxu0 0
    %1269 = vmatmul.mubr.bf16.gmra.mrb[0].mxu0 %v1234
    %v1270 = vpop.f32.mrb[0].mxu0
    %v1271 = vadd.f32 0.0, %v1270
    %v1272 = vpop.f32.mrb[0].mxu0
    %v1273 = vpop.f32.mrb[0].mxu0
    %v1274 = vpop.f32.mrb[0].mxu0
    %1275 = vdwg.mxu0
    %1276 = vrot.lane.b32.xlu0 %v849, 112
    %v1277 = vpop.permute.xlu0 %1276
    %1278 = vrot.lane.b32.xlu0 %v851, 112
    %v1279 = vpop.permute.xlu0 %1278
    %v1281 = vsel %vm853, %v1277, 0
    %v1284 = vsel %vm853, %v1279, 0
    %1286 = vmatprep.subr.bf16.mxu0 0
    %1287 = vmatpush1.bf16.xpose.msra.mxu0 %v1284
    %1288 = vmatprep.subr.bf16.mxu0 0
    %1289 = vmatpush1.bf16.xpose.msra.mxu0 0
    %1290 = vmatprep.subr.bf16.mxu0 0
    %1291 = vmatpush1.bf16.xpose.msra.mxu0 0
    %1292 = vmatprep.subr.bf16.mxu0 0
    %1293 = vmatpush1.bf16.xpose.msra.mxu0 0
    %1294 = vmatprep.subr.bf16.mxu0 0
    %1295 = vmatpush1.bf16.xpose.msra.mxu0 0
    %1296 = vmatprep.subr.bf16.mxu0 0
    %1297 = vmatpush1.bf16.xpose.msra.mxu0 0
    %1298 = vmatprep.subr.bf16.mxu0 0
    %1299 = vmatpush1.bf16.xpose.msra.mxu0 0
    %1300 = vmatprep.subr.bf16.mxu0 0
    %1301 = vmatpush1.bf16.xpose.msra.mxu0 0
    %1302 = vmatprep.subr.bf16.mxu0 0
    %1303 = vmatpush1.bf16.xpose.msra.mxu0 0
    %1304 = vmatprep.subr.bf16.mxu0 0
    %1305 = vmatpush1.bf16.xpose.msra.mxu0 0
    %1306 = vmatprep.subr.bf16.mxu0 0
    %1307 = vmatpush1.bf16.xpose.msra.mxu0 0
    %1308 = vmatprep.subr.bf16.mxu0 0
    %1309 = vmatpush1.bf16.xpose.msra.mxu0 0
    %1310 = vmatprep.subr.bf16.mxu0 0
    %1311 = vmatpush1.bf16.xpose.msra.mxu0 0
    %1312 = vmatprep.subr.bf16.mxu0 0
    %1313 = vmatpush1.bf16.xpose.msra.mxu0 0
    %1314 = vmatprep.subr.bf16.mxu0 0
    %1315 = vmatpush1.bf16.xpose.msra.mxu0 0
    %1316 = vmatprep.subr.bf16.mxu0 0
    %1317 = vmatpush1.bf16.xpose.msra.mxu0 0
    %1318 = vmatprep.mubr.bf16.mxu0 0
    %1319 = vmatmul.mubr.bf16.gmra.mrb[0].mxu0 %v1281
    %v1320 = vpop.f32.mrb[0].mxu0
    %v1321 = vadd.f32 0.0, %v1320
    %v1322 = vpop.f32.mrb[0].mxu0
    %v1323 = vpop.f32.mrb[0].mxu0
    %v1324 = vpop.f32.mrb[0].mxu0
    %1325 = vdwg.mxu0
    %1326 = vrot.lane.b32.xlu0 %v850, 112
    %v1327 = vpop.permute.xlu0 %1326
    %1328 = vrot.lane.b32.xlu0 %v852, 112
    %v1329 = vpop.permute.xlu0 %1328
    %v1331 = vsel %vm853, %v1327, 0
    %v1334 = vsel %vm853, %v1329, 0
    %1336 = vmatprep.subr.bf16.mxu0 0
    %1337 = vmatpush1.bf16.xpose.msra.mxu0 %v1334
    %1338 = vmatprep.subr.bf16.mxu0 0
    %1339 = vmatpush1.bf16.xpose.msra.mxu0 0
    %1340 = vmatprep.subr.bf16.mxu0 0
    %1341 = vmatpush1.bf16.xpose.msra.mxu0 0
    %1342 = vmatprep.subr.bf16.mxu0 0
    %1343 = vmatpush1.bf16.xpose.msra.mxu0 0
    %1344 = vmatprep.subr.bf16.mxu0 0
    %1345 = vmatpush1.bf16.xpose.msra.mxu0 0
    %1346 = vmatprep.subr.bf16.mxu0 0
    %1347 = vmatpush1.bf16.xpose.msra.mxu0 0
    %1348 = vmatprep.subr.bf16.mxu0 0
    %1349 = vmatpush1.bf16.xpose.msra.mxu0 0
    %1350 = vmatprep.subr.bf16.mxu0 0
    %1351 = vmatpush1.bf16.xpose.msra.mxu0 0
    %1352 = vmatprep.subr.bf16.mxu0 0
    %1353 = vmatpush1.bf16.xpose.msra.mxu0 0
    %1354 = vmatprep.subr.bf16.mxu0 0
    %1355 = vmatpush1.bf16.xpose.msra.mxu0 0
    %1356 = vmatprep.subr.bf16.mxu0 0
    %1357 = vmatpush1.bf16.xpose.msra.mxu0 0
    %1358 = vmatprep.subr.bf16.mxu0 0
    %1359 = vmatpush1.bf16.xpose.msra.mxu0 0
    %1360 = vmatprep.subr.bf16.mxu0 0
    %1361 = vmatpush1.bf16.xpose.msra.mxu0 0
    %1362 = vmatprep.subr.bf16.mxu0 0
    %1363 = vmatpush1.bf16.xpose.msra.mxu0 0
    %1364 = vmatprep.subr.bf16.mxu0 0
    %1365 = vmatpush1.bf16.xpose.msra.mxu0 0
    %1366 = vmatprep.subr.bf16.mxu0 0
    %1367 = vmatpush1.bf16.xpose.msra.mxu0 0
    %1368 = vmatprep.mubr.bf16.mxu0 0
    %1369 = vmatmul.mubr.bf16.gmra.mrb[0].mxu0 %v1331
    %v1370 = vpop.f32.mrb[0].mxu0
    %v1371 = vadd.f32 0.0, %v1370
    %v1372 = vpop.f32.mrb[0].mxu0
    %v1373 = vpop.f32.mrb[0].mxu0
    %v1374 = vpop.f32.mrb[0].mxu0
    %1375 = vdwg.mxu0
    %v1376 = vsel %vm485, %v1321, -inf
    %1377 = vmax.xlane.f32.xlu0 %v1376
    %v1378 = vpop.xlane.xlu0 %1377
    %v1379 = vsel %vm485, %v1371, -inf
    %1380 = vmax.xlane.f32.xlu0 %v1379
    %v1381 = vpop.xlane.xlu0 %1380
    %v1382 = vsub.f32 %v1321, %v1378
    %v1383 = vsub.f32 %v1371, %v1381
    %v1384 = vmul.f32 %v1382, 1.442695
    %v1385 = vpow.pop %v1384
    %v1386 = vmul.f32 %v1383, 1.442695
    %v1387 = vpow.pop %v1386
    %v1388 = vsel %vm485, %v1385, 0.0
    %1389 = vadd.xlane.f32.xlu0 %v1388
    %v1390 = vpop.xlane.xlu0 %1389
    %v1391 = vsel %vm485, %v1387, 0.0
    %1392 = vadd.xlane.f32.xlu0 %v1391
    %v1393 = vpop.xlane.xlu0 %1392
    %v1394 = vrcp.pop %v1390
    %v1395 = vrcp.pop %v1393
    %v1396 = vmul.f32 %v1385, %v1394
    %v1397 = vmul.f32 %v1387, %v1395
    %v1398 = vpack.c.bf16 %v1396, %v1396
    %v1399 = vpack.c.bf16 %v1397, %v1397
    %1400 = vrot.lane.b32.xlu0 %v391, 112
    %v1401 = vpop.permute.xlu0 %1400
    %v1404 = vsel %vm485, %v1398, 0
    %1406 = vmatprep.subr.bf16.mxu0 0
    %1407 = vmatpush1.bf16.msra.mxu0 %v1401
    %1408 = vmatprep.subr.bf16.mxu0 0
    %1409 = vmatpush1.bf16.msra.mxu0 0
    %1410 = vmatprep.subr.bf16.mxu0 0
    %1411 = vmatpush1.bf16.msra.mxu0 0
    %1412 = vmatprep.subr.bf16.mxu0 0
    %1413 = vmatpush1.bf16.msra.mxu0 0
    %1414 = vmatprep.subr.bf16.mxu0 0
    %1415 = vmatpush1.bf16.msra.mxu0 0
    %1416 = vmatprep.subr.bf16.mxu0 0
    %1417 = vmatpush1.bf16.msra.mxu0 0
    %1418 = vmatprep.subr.bf16.mxu0 0
    %1419 = vmatpush1.bf16.msra.mxu0 0
    %1420 = vmatprep.subr.bf16.mxu0 0
    %1421 = vmatpush1.bf16.msra.mxu0 0
    %1422 = vmatprep.subr.bf16.mxu0 0
    %1423 = vmatpush1.bf16.msra.mxu0 0
    %1424 = vmatprep.subr.bf16.mxu0 0
    %1425 = vmatpush1.bf16.msra.mxu0 0
    %1426 = vmatprep.subr.bf16.mxu0 0
    %1427 = vmatpush1.bf16.msra.mxu0 0
    %1428 = vmatprep.subr.bf16.mxu0 0
    %1429 = vmatpush1.bf16.msra.mxu0 0
    %1430 = vmatprep.subr.bf16.mxu0 0
    %1431 = vmatpush1.bf16.msra.mxu0 0
    %1432 = vmatprep.subr.bf16.mxu0 0
    %1433 = vmatpush1.bf16.msra.mxu0 0
    %1434 = vmatprep.subr.bf16.mxu0 0
    %1435 = vmatpush1.bf16.msra.mxu0 0
    %1436 = vmatprep.subr.bf16.mxu0 0
    %1437 = vmatpush1.bf16.msra.mxu0 0
    %1438 = vmatprep.mubr.bf16.mxu0 0
    %1439 = vmatmul.mubr.bf16.gmra.mrb[0].mxu0 %v1404
    %v1440 = vpop.f32.mrb[0].mxu0
    %v1441 = vadd.f32 0.0, %v1440
    %v1442 = vpop.f32.mrb[0].mxu0
    %v1443 = vpop.f32.mrb[0].mxu0
    %v1444 = vpop.f32.mrb[0].mxu0
    %1445 = vdwg.mxu0
    %1446 = vrot.lane.b32.xlu0 %v392, 112
    %v1447 = vpop.permute.xlu0 %1446
    %v1450 = vsel %vm485, %v1399, 0
    %1452 = vmatprep.subr.bf16.mxu0 0
    %1453 = vmatpush1.bf16.msra.mxu0 %v1447
    %1454 = vmatprep.subr.bf16.mxu0 0
    %1455 = vmatpush1.bf16.msra.mxu0 0
    %1456 = vmatprep.subr.bf16.mxu0 0
    %1457 = vmatpush1.bf16.msra.mxu0 0
    %1458 = vmatprep.subr.bf16.mxu0 0
    %1459 = vmatpush1.bf16.msra.mxu0 0
    %1460 = vmatprep.subr.bf16.mxu0 0
    %1461 = vmatpush1.bf16.msra.mxu0 0
    %1462 = vmatprep.subr.bf16.mxu0 0
    %1463 = vmatpush1.bf16.msra.mxu0 0
    %1464 = vmatprep.subr.bf16.mxu0 0
    %1465 = vmatpush1.bf16.msra.mxu0 0
    %1466 = vmatprep.subr.bf16.mxu0 0
    %1467 = vmatpush1.bf16.msra.mxu0 0
    %1468 = vmatprep.subr.bf16.mxu0 0
    %1469 = vmatpush1.bf16.msra.mxu0 0
    %1470 = vmatprep.subr.bf16.mxu0 0
    %1471 = vmatpush1.bf16.msra.mxu0 0
    %1472 = vmatprep.subr.bf16.mxu0 0
    %1473 = vmatpush1.bf16.msra.mxu0 0
    %1474 = vmatprep.subr.bf16.mxu0 0
    %1475 = vmatpush1.bf16.msra.mxu0 0
    %1476 = vmatprep.subr.bf16.mxu0 0
    %1477 = vmatpush1.bf16.msra.mxu0 0
    %1478 = vmatprep.subr.bf16.mxu0 0
    %1479 = vmatpush1.bf16.msra.mxu0 0
    %1480 = vmatprep.subr.bf16.mxu0 0
    %1481 = vmatpush1.bf16.msra.mxu0 0
    %1482 = vmatprep.subr.bf16.mxu0 0
    %1483 = vmatpush1.bf16.msra.mxu0 0
    %1484 = vmatprep.mubr.bf16.mxu0 0
    %1485 = vmatmul.mubr.bf16.gmra.mrb[0].mxu0 %v1450
    %v1486 = vpop.f32.mrb[0].mxu0
    %v1487 = vadd.f32 0.0, %v1486
    %v1488 = vpop.f32.mrb[0].mxu0
    %v1489 = vpop.f32.mrb[0].mxu0
    %v1490 = vpop.f32.mrb[0].mxu0
    %1491 = vdwg.mxu0
    %1492 = vrot.lane.b32.xlu0 %v849, 104
    %v1493 = vpop.permute.xlu0 %1492
    %1494 = vrot.lane.b32.xlu0 %v851, 104
    %v1495 = vpop.permute.xlu0 %1494
    %v1497 = vsel %vm853, %v1493, 0
    %v1500 = vsel %vm853, %v1495, 0
    %1502 = vmatprep.subr.bf16.mxu0 0
    %1503 = vmatpush1.bf16.xpose.msra.mxu0 %v1500
    %1504 = vmatprep.subr.bf16.mxu0 0
    %1505 = vmatpush1.bf16.xpose.msra.mxu0 0
    %1506 = vmatprep.subr.bf16.mxu0 0
    %1507 = vmatpush1.bf16.xpose.msra.mxu0 0
    %1508 = vmatprep.subr.bf16.mxu0 0
    %1509 = vmatpush1.bf16.xpose.msra.mxu0 0
    %1510 = vmatprep.subr.bf16.mxu0 0
    %1511 = vmatpush1.bf16.xpose.msra.mxu0 0
    %1512 = vmatprep.subr.bf16.mxu0 0
    %1513 = vmatpush1.bf16.xpose.msra.mxu0 0
    %1514 = vmatprep.subr.bf16.mxu0 0
    %1515 = vmatpush1.bf16.xpose.msra.mxu0 0
    %1516 = vmatprep.subr.bf16.mxu0 0
    %1517 = vmatpush1.bf16.xpose.msra.mxu0 0
    %1518 = vmatprep.subr.bf16.mxu0 0
    %1519 = vmatpush1.bf16.xpose.msra.mxu0 0
    %1520 = vmatprep.subr.bf16.mxu0 0
    %1521 = vmatpush1.bf16.xpose.msra.mxu0 0
    %1522 = vmatprep.subr.bf16.mxu0 0
    %1523 = vmatpush1.bf16.xpose.msra.mxu0 0
    %1524 = vmatprep.subr.bf16.mxu0 0
    %1525 = vmatpush1.bf16.xpose.msra.mxu0 0
    %1526 = vmatprep.subr.bf16.mxu0 0
    %1527 = vmatpush1.bf16.xpose.msra.mxu0 0
    %1528 = vmatprep.subr.bf16.mxu0 0
    %1529 = vmatpush1.bf16.xpose.msra.mxu0 0
    %1530 = vmatprep.subr.bf16.mxu0 0
    %1531 = vmatpush1.bf16.xpose.msra.mxu0 0
    %1532 = vmatprep.subr.bf16.mxu0 0
    %1533 = vmatpush1.bf16.xpose.msra.mxu0 0
    %1534 = vmatprep.mubr.bf16.mxu0 0
    %1535 = vmatmul.mubr.bf16.gmra.mrb[0].mxu0 %v1497
    %v1536 = vpop.f32.mrb[0].mxu0
    %v1537 = vadd.f32 0.0, %v1536
    %v1538 = vpop.f32.mrb[0].mxu0
    %v1539 = vpop.f32.mrb[0].mxu0
    %v1540 = vpop.f32.mrb[0].mxu0
    %1541 = vdwg.mxu0
    %1542 = vrot.lane.b32.xlu0 %v850, 104
    %v1543 = vpop.permute.xlu0 %1542
    %1544 = vrot.lane.b32.xlu0 %v852, 104
    %v1545 = vpop.permute.xlu0 %1544
    %v1547 = vsel %vm853, %v1543, 0
    %v1550 = vsel %vm853, %v1545, 0
    %1552 = vmatprep.subr.bf16.mxu0 0
    %1553 = vmatpush1.bf16.xpose.msra.mxu0 %v1550
    %1554 = vmatprep.subr.bf16.mxu0 0
    %1555 = vmatpush1.bf16.xpose.msra.mxu0 0
    %1556 = vmatprep.subr.bf16.mxu0 0
    %1557 = vmatpush1.bf16.xpose.msra.mxu0 0
    %1558 = vmatprep.subr.bf16.mxu0 0
    %1559 = vmatpush1.bf16.xpose.msra.mxu0 0
    %1560 = vmatprep.subr.bf16.mxu0 0
    %1561 = vmatpush1.bf16.xpose.msra.mxu0 0
    %1562 = vmatprep.subr.bf16.mxu0 0
    %1563 = vmatpush1.bf16.xpose.msra.mxu0 0
    %1564 = vmatprep.subr.bf16.mxu0 0
    %1565 = vmatpush1.bf16.xpose.msra.mxu0 0
    %1566 = vmatprep.subr.bf16.mxu0 0
    %1567 = vmatpush1.bf16.xpose.msra.mxu0 0
    %1568 = vmatprep.subr.bf16.mxu0 0
    %1569 = vmatpush1.bf16.xpose.msra.mxu0 0
    %1570 = vmatprep.subr.bf16.mxu0 0
    %1571 = vmatpush1.bf16.xpose.msra.mxu0 0
    %1572 = vmatprep.subr.bf16.mxu0 0
    %1573 = vmatpush1.bf16.xpose.msra.mxu0 0
    %1574 = vmatprep.subr.bf16.mxu0 0
    %1575 = vmatpush1.bf16.xpose.msra.mxu0 0
    %1576 = vmatprep.subr.bf16.mxu0 0
    %1577 = vmatpush1.bf16.xpose.msra.mxu0 0
    %1578 = vmatprep.subr.bf16.mxu0 0
    %1579 = vmatpush1.bf16.xpose.msra.mxu0 0
    %1580 = vmatprep.subr.bf16.mxu0 0
    %1581 = vmatpush1.bf16.xpose.msra.mxu0 0
    %1582 = vmatprep.subr.bf16.mxu0 0
    %1583 = vmatpush1.bf16.xpose.msra.mxu0 0
    %1584 = vmatprep.mubr.bf16.mxu0 0
    %1585 = vmatmul.mubr.bf16.gmra.mrb[0].mxu0 %v1547
    %v1586 = vpop.f32.mrb[0].mxu0
    %v1587 = vadd.f32 0.0, %v1586
    %v1588 = vpop.f32.mrb[0].mxu0
    %v1589 = vpop.f32.mrb[0].mxu0
    %v1590 = vpop.f32.mrb[0].mxu0
    %1591 = vdwg.mxu0
    %v1592 = vsel %vm485, %v1537, -inf
    %1593 = vmax.xlane.f32.xlu0 %v1592
    %v1594 = vpop.xlane.xlu0 %1593
    %v1595 = vsel %vm485, %v1587, -inf
    %1596 = vmax.xlane.f32.xlu0 %v1595
    %v1597 = vpop.xlane.xlu0 %1596
    %v1598 = vsub.f32 %v1537, %v1594
    %v1599 = vsub.f32 %v1587, %v1597
    %v1600 = vmul.f32 %v1598, 1.442695
    %v1601 = vpow.pop %v1600
    %v1602 = vmul.f32 %v1599, 1.442695
    %v1603 = vpow.pop %v1602
    %v1604 = vsel %vm485, %v1601, 0.0
    %1605 = vadd.xlane.f32.xlu0 %v1604
    %v1606 = vpop.xlane.xlu0 %1605
    %v1607 = vsel %vm485, %v1603, 0.0
    %1608 = vadd.xlane.f32.xlu0 %v1607
    %v1609 = vpop.xlane.xlu0 %1608
    %v1610 = vrcp.pop %v1606
    %v1611 = vrcp.pop %v1609
    %v1612 = vmul.f32 %v1601, %v1610
    %v1613 = vmul.f32 %v1603, %v1611
    %v1614 = vpack.c.bf16 %v1612, %v1612
    %v1615 = vpack.c.bf16 %v1613, %v1613
    %1616 = vrot.lane.b32.xlu0 %v391, 104
    %v1617 = vpop.permute.xlu0 %1616
    %v1620 = vsel %vm485, %v1614, 0
    %1622 = vmatprep.subr.bf16.mxu0 0
    %1623 = vmatpush1.bf16.msra.mxu0 %v1617
    %1624 = vmatprep.subr.bf16.mxu0 0
    %1625 = vmatpush1.bf16.msra.mxu0 0
    %1626 = vmatprep.subr.bf16.mxu0 0
    %1627 = vmatpush1.bf16.msra.mxu0 0
    %1628 = vmatprep.subr.bf16.mxu0 0
    %1629 = vmatpush1.bf16.msra.mxu0 0
    %1630 = vmatprep.subr.bf16.mxu0 0
    %1631 = vmatpush1.bf16.msra.mxu0 0
    %1632 = vmatprep.subr.bf16.mxu0 0
    %1633 = vmatpush1.bf16.msra.mxu0 0
    %1634 = vmatprep.subr.bf16.mxu0 0
    %1635 = vmatpush1.bf16.msra.mxu0 0
    %1636 = vmatprep.subr.bf16.mxu0 0
    %1637 = vmatpush1.bf16.msra.mxu0 0
    %1638 = vmatprep.subr.bf16.mxu0 0
    %1639 = vmatpush1.bf16.msra.mxu0 0
    %1640 = vmatprep.subr.bf16.mxu0 0
    %1641 = vmatpush1.bf16.msra.mxu0 0
    %1642 = vmatprep.subr.bf16.mxu0 0
    %1643 = vmatpush1.bf16.msra.mxu0 0
    %1644 = vmatprep.subr.bf16.mxu0 0
    %1645 = vmatpush1.bf16.msra.mxu0 0
    %1646 = vmatprep.subr.bf16.mxu0 0
    %1647 = vmatpush1.bf16.msra.mxu0 0
    %1648 = vmatprep.subr.bf16.mxu0 0
    %1649 = vmatpush1.bf16.msra.mxu0 0
    %1650 = vmatprep.subr.bf16.mxu0 0
    %1651 = vmatpush1.bf16.msra.mxu0 0
    %1652 = vmatprep.subr.bf16.mxu0 0
    %1653 = vmatpush1.bf16.msra.mxu0 0
    %1654 = vmatprep.mubr.bf16.mxu0 0
    %1655 = vmatmul.mubr.bf16.gmra.mrb[0].mxu0 %v1620
    %v1656 = vpop.f32.mrb[0].mxu0
    %v1657 = vadd.f32 0.0, %v1656
    %v1658 = vpop.f32.mrb[0].mxu0
    %v1659 = vpop.f32.mrb[0].mxu0
    %v1660 = vpop.f32.mrb[0].mxu0
    %1661 = vdwg.mxu0
    %1662 = vrot.lane.b32.xlu0 %v392, 104
    %v1663 = vpop.permute.xlu0 %1662
    %v1666 = vsel %vm485, %v1615, 0
    %1668 = vmatprep.subr.bf16.mxu0 0
    %1669 = vmatpush1.bf16.msra.mxu0 %v1663
    %1670 = vmatprep.subr.bf16.mxu0 0
    %1671 = vmatpush1.bf16.msra.mxu0 0
    %1672 = vmatprep.subr.bf16.mxu0 0
    %1673 = vmatpush1.bf16.msra.mxu0 0
    %1674 = vmatprep.subr.bf16.mxu0 0
    %1675 = vmatpush1.bf16.msra.mxu0 0
    %1676 = vmatprep.subr.bf16.mxu0 0
    %1677 = vmatpush1.bf16.msra.mxu0 0
    %1678 = vmatprep.subr.bf16.mxu0 0
    %1679 = vmatpush1.bf16.msra.mxu0 0
    %1680 = vmatprep.subr.bf16.mxu0 0
    %1681 = vmatpush1.bf16.msra.mxu0 0
    %1682 = vmatprep.subr.bf16.mxu0 0
    %1683 = vmatpush1.bf16.msra.mxu0 0
    %1684 = vmatprep.subr.bf16.mxu0 0
    %1685 = vmatpush1.bf16.msra.mxu0 0
    %1686 = vmatprep.subr.bf16.mxu0 0
    %1687 = vmatpush1.bf16.msra.mxu0 0
    %1688 = vmatprep.subr.bf16.mxu0 0
    %1689 = vmatpush1.bf16.msra.mxu0 0
    %1690 = vmatprep.subr.bf16.mxu0 0
    %1691 = vmatpush1.bf16.msra.mxu0 0
    %1692 = vmatprep.subr.bf16.mxu0 0
    %1693 = vmatpush1.bf16.msra.mxu0 0
    %1694 = vmatprep.subr.bf16.mxu0 0
    %1695 = vmatpush1.bf16.msra.mxu0 0
    %1696 = vmatprep.subr.bf16.mxu0 0
    %1697 = vmatpush1.bf16.msra.mxu0 0
    %1698 = vmatprep.subr.bf16.mxu0 0
    %1699 = vmatpush1.bf16.msra.mxu0 0
    %1700 = vmatprep.mubr.bf16.mxu0 0
    %1701 = vmatmul.mubr.bf16.gmra.mrb[0].mxu0 %v1666
    %v1702 = vpop.f32.mrb[0].mxu0
    %v1703 = vadd.f32 0.0, %v1702
    %v1704 = vpop.f32.mrb[0].mxu0
    %v1705 = vpop.f32.mrb[0].mxu0
    %v1706 = vpop.f32.mrb[0].mxu0
    %1707 = vdwg.mxu0
    %1710 = vrot.lane.b32.xlu0 %v1224, 8
    %v1711 = vpop.permute.xlu0 %1710
    %1712 = vrot.lane.b32.xlu0 %v1271, 8
    %v1713 = vpop.permute.xlu0 %1712
    %1718 = vrot.lane.b32.xlu0 %v1441, 16
    %v1719 = vpop.permute.xlu0 %1718
    %1720 = vrot.lane.b32.xlu0 %v1487, 16
    %v1721 = vpop.permute.xlu0 %1720
    %1726 = vrot.lane.b32.xlu0 %v1657, 24
    %v1727 = vpop.permute.xlu0 %1726
    %1728 = vrot.lane.b32.xlu0 %v1703, 24
    %v1729 = vpop.permute.xlu0 %1728
    %v1732 = vsel %vm853, %v1008, %v1711
    %v1733 = vsel %vm853, %v1051, %v1713
    %v1734 = vsel %vm485, %v1732, %v1719
    %v1735 = vsel %vm485, %v1733, %v1721
    %vm1736 = vcmask 195584
    %v1737 = vsel %vm1736, %v1734, %v1727
    %v1738 = vsel %vm1736, %v1735, %v1729
    %1739 = vst.msk [vmem:[#allocation14] sm:$0xff] %vm180, %v1737
    %1740 = vst.msk [vmem:[#allocation14 + $0x8] sm:$0xff] %vm180, %v1738
    // Predicated region
    $region86: #{tpu_custom_call.1} parent=1 // pred_check
      _
    $region87: #{tpu_custom_call.1} parent=1 // pred_check_branch
      %1742 = sbr.rel (0) target = $region89
    $region88: #{tpu_custom_call.1} parent=1 // pred_region
      %s1744 = ssub.s32 256, 256
      %1745 = vsyncadd [#allocation4], %s1744
      %s1746 = sshll.u32 [#allocation14], 4
      %s1747 = int_to_ptr.vmem [resolvable:$true] %s1746
      %1752 = dma.vmem_to_hbm [thread:$0]  %s1747, 256, %s14, [#allocation4], 128, 128, 8
    $region89: #{tpu_custom_call.1} parent=1 // pred_fallthru
      _
    // Predicated region
    $region90: #{tpu_custom_call.1} parent=1 // pred_check
      _
    $region91: #{tpu_custom_call.1} parent=1 // pred_check_branch
      %1754 = sbr.rel (0) target = $region93
    $region92: #{tpu_custom_call.1} parent=1 // pred_region
      %1755 = dma.done [#allocation4], 256
    $region93: #{tpu_custom_call.1} parent=1 // pred_fallthru
      _
    %1756 = vsyncpa [#allocation3], 1
    %1757 = vsyncpa [#allocation6], 1
    %1758 = vsyncpa [#allocation9], 1
    %1759 = vsyncpa [#allocation12], 1
    %1760 = vsyncpa [#allocation4], 1

</llo_original>
